<compile_context>
chip_gen: v6e
topology: v6e:2x2x1
jax: 0.10.0
libtpu: 0.0.40
codegen_flags: <defaults>
</compile_context>

<pallas_src>
import functools
import math

import jax
import jax.numpy as jnp
from jax.experimental import pallas as pl
from jax.experimental.pallas import tpu as pltpu


def _gelu(x):
    # exact (erf-based) GELU, matching nn.GELU(approximate='none')
    return 0.5 * x * (1.0 + jax.lax.erf(x * (1.0 / math.sqrt(2.0))))


def _batchnorm(x, g, b, eps):
    # training-mode BatchNorm forward: batch statistics, biased variance
    mean = jnp.mean(x, axis=0, keepdims=True)
    var = jnp.mean((x - mean) ** 2, axis=0, keepdims=True)
    return (x - mean) * jax.lax.rsqrt(var + eps) * g + b


# ----------------------------------- kernel -----------------------------------

def attention_block_kernel(
        # edge index (VMEM, int32)
        src_col_ref, dst_col_ref, dst_row_ref,
        # activations / parameters (VMEM)
        node_ref, edge_ref,
        wqkvs_ref, bqkvs_ref, we_ref, segT_ref,
        g1_ref, b1_ref, g2_ref, b2_ref,
        wf1_ref, bf1_ref, wf2_ref, bf2_ref,
        wep_e_ref, wep_x_ref, wep_y_ref, bep1_ref,
        wep2_ref, bep2_ref, ge_ref, beN_ref,
        # outputs
        node_out_ref, edge_out_ref,
        *, heads, dim_head, eps):
    f32 = jnp.float32
    bf16 = jnp.bfloat16
    H, C = heads, dim_head
    HC = H * C
    E = src_col_ref.shape[0]
    N = node_ref.shape[0]

    # -------------- one-hot edge-index matrices (VPU iota compare, no loops) --------------
    node_iota = jax.lax.broadcasted_iota(jnp.int32, (E, N), 1)
    s_src = (src_col_ref[...] == node_iota).astype(f32)        # [E, N] gather source rows j
    dst_hit = dst_col_ref[...] == node_iota                    # bool [E, N]
    s_dst = dst_hit.astype(f32)                                # [E, N] gather target rows i
    edge_iota = jax.lax.broadcasted_iota(jnp.int32, (N, E), 1)
    s_dst_t = (dst_row_ref[...] == edge_iota).astype(f32)      # [N, E] scatter-add to i

    # -------------- AttentionConv (TransformerConv, concat=True, beta=False) --------------
    # fused Q|K|V|skip projection (bf16 MXU inputs, f32 accumulation);
    # 1/sqrt(C) is pre-folded into the query columns by the wrapper.
    x = node_ref[...]
    qkvs = jnp.dot(x.astype(bf16), wqkvs_ref[...],
                   preferred_element_type=f32) + bqkvs_ref[...]
    q = qkvs[:, 0 * HC:1 * HC]
    k = qkvs[:, 1 * HC:2 * HC]
    v = qkvs[:, 2 * HC:3 * HC]
    skip = qkvs[:, 3 * HC:4 * HC]                              # lin_skip(x)

    eproj = jnp.dot(edge_ref[...].astype(bf16), we_ref[...],
                    preferred_element_type=f32)                # lin_edge (no bias), [E, HC]

    # per-edge gathers as one-hot MXU matmuls (f32 one-hot => exact row selects)
    q_e = jnp.dot(s_dst, q, preferred_element_type=f32)            # query_i   (scaled)
    k_e = jnp.dot(s_src, k, preferred_element_type=f32) + eproj    # key_j + lin_edge(e)
    v_e = jnp.dot(s_src, v, preferred_element_type=f32) + eproj    # value_j + lin_edge(e)
    qk = q_e * k_e                                                 # [E, HC]

    # -------------- numerically stable segment softmax (per target node, per head) --------
    segT = segT_ref[...]                                       # [H, HC] 0/1 head->channel rows
    pe_hc = jnp.zeros((E, HC), f32)                            # exp(logit - max), head-broadcast
    for h in range(H):                                         # static unroll, H is small
        lcol = jnp.sum(qk[:, h * C:(h + 1) * C], axis=1, keepdims=True)   # [E,1] logits (pre-scaled)
        masked = jnp.where(dst_hit, lcol, -1e30)                          # [E,N]
        mrow = jnp.max(masked, axis=0, keepdims=True)                     # [1,N] per-node max
        medge = jnp.sum(s_dst * mrow, axis=1, keepdims=True)              # [E,1] max at dst (one-hot gather)
        pe_hc = pe_hc + jnp.exp(lcol - medge) * segT[h:h + 1, :]          # broadcast to head channels

    wv = pe_hc * v_e                                           # alpha-weighted messages [E, HC]

    # segment-sum scatters (aggr='add') as one-hot-transpose matmuls
    num = jnp.dot(s_dst_t, wv, preferred_element_type=f32)     # [N, HC]
    den = jnp.dot(s_dst_t, pe_hc, preferred_element_type=f32)  # [N, HC] softmax denominator
    den = jnp.where(den == 0.0, 1.0, den)                      # only genuinely isolated nodes
    attn = num / den + skip                                    # + root weight (beta=False)

    # -------------- node branch: BN1 -> FFN -> residual -> BN2 ----------------------------
    node1 = _batchnorm(attn, g1_ref[...], b1_ref[...], eps)
    hmid = _gelu(jnp.dot(node1.astype(bf16), wf1_ref[...],
                         preferred_element_type=f32) + bf1_ref[...])
    h2 = jnp.dot(hmid.astype(bf16), wf2_ref[...],
                 preferred_element_type=f32) + bf2_ref[...]
    node2 = _batchnorm(h2 + node1, g2_ref[...], b2_ref[...], eps)   # pre-activation
    node_out_ref[...] = _gelu(node2)

    # -------------- edge branch: project to dim_edge BEFORE gathering ---------------------
    # cat([e, nx-ny, nx+ny]) @ Wep1 == e@We1 + nx@(Wd+Ws) + ny@(Ws-Wd)
    px = jnp.dot(node2.astype(bf16), wep_x_ref[...], preferred_element_type=f32)  # [N, de]
    py = jnp.dot(node2.astype(bf16), wep_y_ref[...], preferred_element_type=f32)  # [N, de]
    he = (jnp.dot(edge_ref[...].astype(bf16), wep_e_ref[...], preferred_element_type=f32)
          + jnp.dot(s_src, px, preferred_element_type=f32)    # node_out[src] contribution
          + jnp.dot(s_dst, py, preferred_element_type=f32)    # node_out[dst] contribution
          + bep1_ref[...])
    he = _gelu(he)
    he2 = jnp.dot(he.astype(bf16), wep2_ref[...], preferred_element_type=f32) + bep2_ref[...]
    edge_out_ref[...] = _gelu(_batchnorm(he2, ge_ref[...], beN_ref[...], eps))


# ----------------------------- parameters / forward -----------------------------

def init_params(key, in_channels, out_channels, heads, dim_head, dim_linear_block, dim_edge):
    hc = heads * dim_head
    assert hc == out_channels
    keys = jax.random.split(key, 9)

    def lin(k, fin, fout):
        kw, kb = jax.random.split(k)
        s = 1.0 / math.sqrt(fin)
        w = jax.random.uniform(kw, (fin, fout), jnp.float32, -s, s)
        b = jax.random.uniform(kb, (fout,), jnp.float32, -s, s)
        return w, b

    p = {}
    p['Wq'], p['bq'] = lin(keys[0], in_channels, hc)
    p['Wk'], p['bk'] = lin(keys[1], in_channels, hc)
    p['Wv'], p['bv'] = lin(keys[2], in_channels, hc)
    p['We'], _ = lin(keys[3], dim_edge, hc)            # lin_edge has no bias
    p['Ws'], p['bs'] = lin(keys[4], in_channels, hc)   # lin_skip
    p['g1'] = jnp.ones((out_channels,), jnp.float32)
    p['b1'] = jnp.zeros((out_channels,), jnp.float32)
    p['g2'] = jnp.ones((out_channels,), jnp.float32)
    p['b2'] = jnp.zeros((out_channels,), jnp.float32)
    p['Wf1'], p['bf1'] = lin(keys[5], out_channels, dim_linear_block)
    p['Wf2'], p['bf2'] = lin(keys[6], dim_linear_block, out_channels)
    p['Wep1'], p['bep1'] = lin(keys[7], dim_edge + 2 * out_channels, dim_edge)
    p['Wep2'], p['bep2'] = lin(keys[8], dim_edge, dim_edge)
    p['ge'] = jnp.ones((dim_edge,), jnp.float32)
    p['beN'] = jnp.zeros((dim_edge,), jnp.float32)
    return p


def attention_block_forward(params, node_attr, edge_attr, edge_index, heads, dim_head):
    n_nodes = node_attr.shape[0]
    n_edges, dim_edge = edge_attr.shape
    hc = heads * dim_head
    f32 = jnp.float32
    bf16 = jnp.bfloat16
    inv_sqrt_c = 1.0 / math.sqrt(dim_head)

    # fused Q|K|V|skip weights; fold 1/sqrt(C) into the query columns (free micro-win)
    wqkvs = jnp.concatenate([params['Wq'] * inv_sqrt_c, params['Wk'],
                             params['Wv'], params['Ws']], axis=1).astype(bf16)
    bqkvs = jnp.concatenate([params['bq'] * inv_sqrt_c, params['bk'],
                             params['bv'], params['bs']]).reshape(1, 4 * hc).astype(f32)

    # head -> channel broadcast rows (0/1), [H, HC]
    segT = jnp.repeat(jnp.eye(heads, dtype=f32), dim_head, axis=1)

    # split edge-MLP layer 1 so no in-kernel concat is needed
    w_e1 = params['Wep1'][:dim_edge]
    w_d = params['Wep1'][dim_edge:dim_edge + hc]
    w_s = params['Wep1'][dim_edge + hc:]
    wep_x = w_d + w_s          # coefficient of node_out[src]
    wep_y = w_s - w_d          # coefficient of node_out[dst]

    def row(v):
        return v.reshape(1, -1).astype(f32)

    src_col = edge_index[0].astype(jnp.int32).reshape(n_edges, 1)
    dst_col = edge_index[1].astype(jnp.int32).reshape(n_edges, 1)
    dst_row = edge_index[1].astype(jnp.int32).reshape(1, n_edges)

    inputs = (
        src_col, dst_col, dst_row,
        node_attr.astype(f32), edge_attr.astype(f32),
        wqkvs, bqkvs, params['We'].astype(bf16), segT,
        row(params['g1']), row(params['b1']), row(params['g2']), row(params['b2']),
        params['Wf1'].astype(bf16), row(params['bf1']),
        params['Wf2'].astype(bf16), row(params['bf2']),
        w_e1.astype(bf16), wep_x.astype(bf16), wep_y.astype(bf16), row(params['bep1']),
        params['Wep2'].astype(bf16), row(params['bep2']),
        row(params['ge']), row(params['beN']),
    )

    def full_spec(shape):
        # whole-array block (allowed regardless of (8,128) since it equals the full dims)
        return pl.BlockSpec(tuple(shape), lambda *_: (0,) * len(shape))

    kernel = functools.partial(attention_block_kernel,
                               heads=heads, dim_head=dim_head, eps=1e-5)

    # TODO(synk): for large graphs, tile E/N with a 'parallel' grid axis (v7x megacore),
    #             pipeline edge blocks via Buffered BlockSpecs, and emit a lane-dense
    #             (padded/transposed) output slab; unnecessary at this toy size.
    node_out, edge_out = pl.pallas_call(
        kernel,
        grid=(1,),
        in_specs=[full_spec(a.shape) for a in inputs],
        out_specs=(full_spec((n_nodes, hc)), full_spec((n_edges, dim_edge))),
        out_shape=(jax.ShapeDtypeStruct((n_nodes, hc), f32),
                   jax.ShapeDtypeStruct((n_edges, dim_edge), f32)),
        compiler_params=pltpu.CompilerParams(
            dimension_semantics=("arbitrary",),
            vmem_limit_bytes=32 * 1024 * 1024),   # explicit budget; safe on v5e/v6e/v7x
    )(*inputs)
    return node_out, edge_out


# ------------------------------------- main -------------------------------------

if __name__ == "__main__":
    key = jax.random.PRNGKey(0)
    N, E = 12, 24
    in_channels = 16
    heads, dim_head = 4, 8
    out_channels = heads * dim_head          # 32
    dim_linear_block = 64
    dim_edge = 8

    k1, k2, k3 = jax.random.split(key, 3)
    node_attr = jax.random.normal(k1, (N, in_channels), jnp.float32)
    edge_attr = jax.random.normal(k2, (E, dim_edge), jnp.float32)

    # deterministic edge set: every node receives two incoming edges
    dst = jnp.concatenate([jnp.arange(N), jnp.arange(N)]).astype(jnp.int32)
    src = jnp.concatenate([(jnp.arange(N) + 1) % N, (jnp.arange(N) + 3) % N]).astype(jnp.int32)
    edge_index = jnp.stack([src, dst], axis=0)

    params = init_params(k3, in_channels, out_channels, heads, dim_head,
                         dim_linear_block, dim_edge)

    node_out, edge_out = attention_block_forward(params, node_attr, edge_attr,
                                                 edge_index, heads, dim_head)
    jax.block_until_ready((node_out, edge_out))
    assert node_out.shape == (N, out_channels)
    assert edge_out.shape == (E, dim_edge)
    assert bool(jnp.all(jnp.isfinite(node_out))) and bool(jnp.all(jnp.isfinite(edge_out)))
    print("KERNEL_OK")
</pallas_src>

<mosaic_0001>
module attributes {stable_mosaic.version = 11 : i64} {
  func.func @attention_block_kernel(%arg0: i32, %arg1: memref<24x1xi32, #tpu.memory_space<vmem>>, %arg2: memref<24x1xi32, #tpu.memory_space<vmem>>, %arg3: memref<1x24xi32, #tpu.memory_space<vmem>>, %arg4: memref<12x16xf32, #tpu.memory_space<vmem>>, %arg5: memref<24x8xf32, #tpu.memory_space<vmem>>, %arg6: memref<16x128xbf16, #tpu.memory_space<vmem>>, %arg7: memref<1x128xf32, #tpu.memory_space<vmem>>, %arg8: memref<8x32xbf16, #tpu.memory_space<vmem>>, %arg9: memref<4x32xf32, #tpu.memory_space<vmem>>, %arg10: memref<1x32xf32, #tpu.memory_space<vmem>>, %arg11: memref<1x32xf32, #tpu.memory_space<vmem>>, %arg12: memref<1x32xf32, #tpu.memory_space<vmem>>, %arg13: memref<1x32xf32, #tpu.memory_space<vmem>>, %arg14: memref<32x64xbf16, #tpu.memory_space<vmem>>, %arg15: memref<1x64xf32, #tpu.memory_space<vmem>>, %arg16: memref<64x32xbf16, #tpu.memory_space<vmem>>, %arg17: memref<1x32xf32, #tpu.memory_space<vmem>>, %arg18: memref<8x8xbf16, #tpu.memory_space<vmem>>, %arg19: memref<32x8xbf16, #tpu.memory_space<vmem>>, %arg20: memref<32x8xbf16, #tpu.memory_space<vmem>>, %arg21: memref<1x8xf32, #tpu.memory_space<vmem>>, %arg22: memref<8x8xbf16, #tpu.memory_space<vmem>>, %arg23: memref<1x8xf32, #tpu.memory_space<vmem>>, %arg24: memref<1x8xf32, #tpu.memory_space<vmem>>, %arg25: memref<1x8xf32, #tpu.memory_space<vmem>>, %arg26: memref<12x32xf32, #tpu.memory_space<vmem>>, %arg27: memref<24x8xf32, #tpu.memory_space<vmem>>) attributes {dimension_semantics = [#tpu.dimension_semantics<arbitrary>], iteration_bounds = array<i64: 1>, scalar_prefetch = 0 : i64, scratch_operands = 0 : i64, tpu.core_type = #tpu.core_type<tc>, window_params = [{pipeline_mode = #tpu.pipeline_mode<synchronous>, transform_indices = @transform_0, window_bounds = array<i64: 24, 1>}, {pipeline_mode = #tpu.pipeline_mode<synchronous>, transform_indices = @transform_1, window_bounds = array<i64: 24, 1>}, {pipeline_mode = #tpu.pipeline_mode<synchronous>, transform_indices = @transform_2, window_bounds = array<i64: 1, 24>}, {pipeline_mode = #tpu.pipeline_mode<synchronous>, transform_indices = @transform_3, window_bounds = array<i64: 12, 16>}, {pipeline_mode = #tpu.pipeline_mode<synchronous>, transform_indices = @transform_4, window_bounds = array<i64: 24, 8>}, {pipeline_mode = #tpu.pipeline_mode<synchronous>, transform_indices = @transform_5, window_bounds = array<i64: 16, 128>}, {pipeline_mode = #tpu.pipeline_mode<synchronous>, transform_indices = @transform_6, window_bounds = array<i64: 1, 128>}, {pipeline_mode = #tpu.pipeline_mode<synchronous>, transform_indices = @transform_7, window_bounds = array<i64: 8, 32>}, {pipeline_mode = #tpu.pipeline_mode<synchronous>, transform_indices = @transform_8, window_bounds = array<i64: 4, 32>}, {pipeline_mode = #tpu.pipeline_mode<synchronous>, transform_indices = @transform_9, window_bounds = array<i64: 1, 32>}, {pipeline_mode = #tpu.pipeline_mode<synchronous>, transform_indices = @transform_10, window_bounds = array<i64: 1, 32>}, {pipeline_mode = #tpu.pipeline_mode<synchronous>, transform_indices = @transform_11, window_bounds = array<i64: 1, 32>}, {pipeline_mode = #tpu.pipeline_mode<synchronous>, transform_indices = @transform_12, window_bounds = array<i64: 1, 32>}, {pipeline_mode = #tpu.pipeline_mode<synchronous>, transform_indices = @transform_13, window_bounds = array<i64: 32, 64>}, {pipeline_mode = #tpu.pipeline_mode<synchronous>, transform_indices = @transform_14, window_bounds = array<i64: 1, 64>}, {pipeline_mode = #tpu.pipeline_mode<synchronous>, transform_indices = @transform_15, window_bounds = array<i64: 64, 32>}, {pipeline_mode = #tpu.pipeline_mode<synchronous>, transform_indices = @transform_16, window_bounds = array<i64: 1, 32>}, {pipeline_mode = #tpu.pipeline_mode<synchronous>, transform_indices = @transform_17, window_bounds = array<i64: 8, 8>}, {pipeline_mode = #tpu.pipeline_mode<synchronous>, transform_indices = @transform_18, window_bounds = array<i64: 32, 8>}, {pipeline_mode = #tpu.pipeline_mode<synchronous>, transform_indices = @transform_19, window_bounds = array<i64: 32, 8>}, {pipeline_mode = #tpu.pipeline_mode<synchronous>, transform_indices = @transform_20, window_bounds = array<i64: 1, 8>}, {pipeline_mode = #tpu.pipeline_mode<synchronous>, transform_indices = @transform_21, window_bounds = array<i64: 8, 8>}, {pipeline_mode = #tpu.pipeline_mode<synchronous>, transform_indices = @transform_22, window_bounds = array<i64: 1, 8>}, {pipeline_mode = #tpu.pipeline_mode<synchronous>, transform_indices = @transform_23, window_bounds = array<i64: 1, 8>}, {pipeline_mode = #tpu.pipeline_mode<synchronous>, transform_indices = @transform_24, window_bounds = array<i64: 1, 8>}, {pipeline_mode = #tpu.pipeline_mode<synchronous>, transform_indices = @transform_25, window_bounds = array<i64: 12, 32>}, {pipeline_mode = #tpu.pipeline_mode<synchronous>, transform_indices = @transform_26, window_bounds = array<i64: 24, 8>}]} {
    %0 = tpu.iota {dimensions = array<i32: 1>} : vector<24x12xi32>
    %c0 = arith.constant 0 : index
    %c0_0 = arith.constant 0 : index
    %1 = vector.load %arg1[%c0, %c0_0] : memref<24x1xi32, #tpu.memory_space<vmem>>, vector<24x1xi32>
    %2 = vector.broadcast %1 : vector<24x1xi32> to vector<24x12xi32>
    %3 = arith.cmpi eq, %2, %0 : vector<24x12xi32>
    %4 = arith.extui %3 : vector<24x12xi1> to vector<24x12xi32>
    %5 = arith.sitofp %4 : vector<24x12xi32> to vector<24x12xf32>
    %c0_1 = arith.constant 0 : index
    %c0_2 = arith.constant 0 : index
    %6 = vector.load %arg2[%c0_1, %c0_2] : memref<24x1xi32, #tpu.memory_space<vmem>>, vector<24x1xi32>
    %7 = vector.broadcast %6 : vector<24x1xi32> to vector<24x12xi32>
    %8 = arith.cmpi eq, %7, %0 : vector<24x12xi32>
    %9 = arith.extui %8 : vector<24x12xi1> to vector<24x12xi32>
    %10 = arith.sitofp %9 : vector<24x12xi32> to vector<24x12xf32>
    %11 = tpu.iota {dimensions = array<i32: 1>} : vector<12x24xi32>
    %c0_3 = arith.constant 0 : index
    %c0_4 = arith.constant 0 : index
    %12 = vector.load %arg3[%c0_3, %c0_4] : memref<1x24xi32, #tpu.memory_space<vmem>>, vector<1x24xi32>
    %13 = vector.broadcast %12 : vector<1x24xi32> to vector<12x24xi32>
    %14 = arith.cmpi eq, %13, %11 : vector<12x24xi32>
    %15 = arith.extui %14 : vector<12x24xi1> to vector<12x24xi32>
    %16 = arith.sitofp %15 : vector<12x24xi32> to vector<12x24xf32>
    %c0_5 = arith.constant 0 : index
    %c0_6 = arith.constant 0 : index
    %17 = vector.load %arg4[%c0_5, %c0_6] : memref<12x16xf32, #tpu.memory_space<vmem>>, vector<12x16xf32>
    %18 = arith.truncf %17 : vector<12x16xf32> to vector<12x16xbf16>
    %c0_7 = arith.constant 0 : index
    %c0_8 = arith.constant 0 : index
    %19 = vector.load %arg6[%c0_7, %c0_8] : memref<16x128xbf16, #tpu.memory_space<vmem>>, vector<16x128xbf16>
    %cst = arith.constant dense<0.000000e+00> : vector<12x128xf32>
    %20 = tpu.matmul %18, %19, %cst {dimension_numbers = #tpu.dot_dimension_numbers<[1], [0], [0], [1], [0, 0, 1, 1], [], []>} : vector<12x16xbf16>, vector<16x128xbf16>, vector<12x128xf32> -> vector<12x128xf32>
    %c0_9 = arith.constant 0 : index
    %c0_10 = arith.constant 0 : index
    %21 = vector.load %arg7[%c0_9, %c0_10] : memref<1x128xf32, #tpu.memory_space<vmem>>, vector<1x128xf32>
    %22 = vector.broadcast %21 : vector<1x128xf32> to vector<12x128xf32>
    %23 = arith.addf %20, %22 : vector<12x128xf32>
    %24 = vector.extract_strided_slice %23 {offsets = [0, 0], sizes = [12, 32], strides = [1, 1]} : vector<12x128xf32> to vector<12x32xf32>
    %25 = vector.extract_strided_slice %23 {offsets = [0, 32], sizes = [12, 32], strides = [1, 1]} : vector<12x128xf32> to vector<12x32xf32>
    %26 = vector.extract_strided_slice %23 {offsets = [0, 64], sizes = [12, 32], strides = [1, 1]} : vector<12x128xf32> to vector<12x32xf32>
    %27 = vector.extract_strided_slice %23 {offsets = [0, 96], sizes = [12, 32], strides = [1, 1]} : vector<12x128xf32> to vector<12x32xf32>
    %c0_11 = arith.constant 0 : index
    %c0_12 = arith.constant 0 : index
    %28 = vector.load %arg5[%c0_11, %c0_12] : memref<24x8xf32, #tpu.memory_space<vmem>>, vector<24x8xf32>
    %29 = arith.truncf %28 : vector<24x8xf32> to vector<24x8xbf16>
    %c0_13 = arith.constant 0 : index
    %c0_14 = arith.constant 0 : index
    %30 = vector.load %arg8[%c0_13, %c0_14] : memref<8x32xbf16, #tpu.memory_space<vmem>>, vector<8x32xbf16>
    %cst_15 = arith.constant dense<0.000000e+00> : vector<24x32xf32>
    %31 = tpu.matmul %29, %30, %cst_15 {dimension_numbers = #tpu.dot_dimension_numbers<[1], [0], [0], [1], [0, 0, 1, 1], [], []>} : vector<24x8xbf16>, vector<8x32xbf16>, vector<24x32xf32> -> vector<24x32xf32>
    %cst_16 = arith.constant dense<0.000000e+00> : vector<24x32xf32>
    %32 = tpu.matmul %10, %24, %cst_16 {dimension_numbers = #tpu.dot_dimension_numbers<[1], [0], [0], [1], [0, 0, 1, 1], [], []>} : vector<24x12xf32>, vector<12x32xf32>, vector<24x32xf32> -> vector<24x32xf32>
    %cst_17 = arith.constant dense<0.000000e+00> : vector<24x32xf32>
    %33 = tpu.matmul %5, %25, %cst_17 {dimension_numbers = #tpu.dot_dimension_numbers<[1], [0], [0], [1], [0, 0, 1, 1], [], []>} : vector<24x12xf32>, vector<12x32xf32>, vector<24x32xf32> -> vector<24x32xf32>
    %34 = arith.addf %33, %31 : vector<24x32xf32>
    %cst_18 = arith.constant dense<0.000000e+00> : vector<24x32xf32>
    %35 = tpu.matmul %5, %26, %cst_18 {dimension_numbers = #tpu.dot_dimension_numbers<[1], [0], [0], [1], [0, 0, 1, 1], [], []>} : vector<24x12xf32>, vector<12x32xf32>, vector<24x32xf32> -> vector<24x32xf32>
    %36 = arith.addf %35, %31 : vector<24x32xf32>
    %37 = arith.mulf %32, %34 : vector<24x32xf32>
    %c0_19 = arith.constant 0 : index
    %c0_20 = arith.constant 0 : index
    %38 = vector.load %arg9[%c0_19, %c0_20] : memref<4x32xf32, #tpu.memory_space<vmem>>, vector<4x32xf32>
    %cst_21 = arith.constant 0.000000e+00 : f32
    %39 = vector.broadcast %cst_21 : f32 to vector<24x32xf32>
    %40 = vector.extract_strided_slice %37 {offsets = [0, 0], sizes = [24, 8], strides = [1, 1]} : vector<24x32xf32> to vector<24x8xf32>
    %cst_22 = arith.constant dense<0.000000e+00> : vector<24xf32>
    %41 = vector.multi_reduction <add>, %40, %cst_22 [1] : vector<24x8xf32> to vector<24xf32>
    %42 = vector.shape_cast %41 : vector<24xf32> to vector<24x1xf32>
    %cst_23 = arith.constant -1.000000e+30 : f32
    %43 = vector.shape_cast %42 : vector<24x1xf32> to vector<24x1xf32>
    %44 = vector.broadcast %43 : vector<24x1xf32> to vector<24x12xf32>
    %45 = vector.broadcast %cst_23 : f32 to vector<24x12xf32>
    %46 = arith.select %8, %44, %45 : vector<24x12xi1>, vector<24x12xf32>
    %cst_24 = arith.constant dense<0xFF800000> : vector<12xf32>
    %47 = vector.multi_reduction <maximumf>, %46, %cst_24 [0] : vector<24x12xf32> to vector<12xf32>
    %48 = vector.shape_cast %47 : vector<12xf32> to vector<1x12xf32>
    %49 = vector.broadcast %48 : vector<1x12xf32> to vector<24x12xf32>
    %50 = arith.mulf %10, %49 : vector<24x12xf32>
    %cst_25 = arith.constant dense<0.000000e+00> : vector<24xf32>
    %51 = vector.multi_reduction <add>, %50, %cst_25 [1] : vector<24x12xf32> to vector<24xf32>
    %52 = vector.shape_cast %51 : vector<24xf32> to vector<24x1xf32>
    %53 = arith.subf %42, %52 : vector<24x1xf32>
    %54 = math.exp %53 : vector<24x1xf32>
    %55 = vector.extract_strided_slice %38 {offsets = [0, 0], sizes = [1, 32], strides = [1, 1]} : vector<4x32xf32> to vector<1x32xf32>
    %56 = vector.broadcast %54 : vector<24x1xf32> to vector<24x32xf32>
    %57 = vector.broadcast %55 : vector<1x32xf32> to vector<24x32xf32>
    %58 = arith.mulf %56, %57 : vector<24x32xf32>
    %59 = arith.addf %39, %58 : vector<24x32xf32>
    %60 = vector.extract_strided_slice %37 {offsets = [0, 8], sizes = [24, 8], strides = [1, 1]} : vector<24x32xf32> to vector<24x8xf32>
    %cst_26 = arith.constant dense<0.000000e+00> : vector<24xf32>
    %61 = vector.multi_reduction <add>, %60, %cst_26 [1] : vector<24x8xf32> to vector<24xf32>
    %62 = vector.shape_cast %61 : vector<24xf32> to vector<24x1xf32>
    %cst_27 = arith.constant -1.000000e+30 : f32
    %63 = vector.shape_cast %62 : vector<24x1xf32> to vector<24x1xf32>
    %64 = vector.broadcast %63 : vector<24x1xf32> to vector<24x12xf32>
    %65 = vector.broadcast %cst_27 : f32 to vector<24x12xf32>
    %66 = arith.select %8, %64, %65 : vector<24x12xi1>, vector<24x12xf32>
    %cst_28 = arith.constant dense<0xFF800000> : vector<12xf32>
    %67 = vector.multi_reduction <maximumf>, %66, %cst_28 [0] : vector<24x12xf32> to vector<12xf32>
    %68 = vector.shape_cast %67 : vector<12xf32> to vector<1x12xf32>
    %69 = vector.broadcast %68 : vector<1x12xf32> to vector<24x12xf32>
    %70 = arith.mulf %10, %69 : vector<24x12xf32>
    %cst_29 = arith.constant dense<0.000000e+00> : vector<24xf32>
    %71 = vector.multi_reduction <add>, %70, %cst_29 [1] : vector<24x12xf32> to vector<24xf32>
    %72 = vector.shape_cast %71 : vector<24xf32> to vector<24x1xf32>
    %73 = arith.subf %62, %72 : vector<24x1xf32>
    %74 = math.exp %73 : vector<24x1xf32>
    %75 = vector.extract_strided_slice %38 {offsets = [1, 0], sizes = [1, 32], strides = [1, 1]} : vector<4x32xf32> to vector<1x32xf32>
    %76 = vector.broadcast %74 : vector<24x1xf32> to vector<24x32xf32>
    %77 = vector.broadcast %75 : vector<1x32xf32> to vector<24x32xf32>
    %78 = arith.mulf %76, %77 : vector<24x32xf32>
    %79 = arith.addf %59, %78 : vector<24x32xf32>
    %80 = vector.extract_strided_slice %37 {offsets = [0, 16], sizes = [24, 8], strides = [1, 1]} : vector<24x32xf32> to vector<24x8xf32>
    %cst_30 = arith.constant dense<0.000000e+00> : vector<24xf32>
    %81 = vector.multi_reduction <add>, %80, %cst_30 [1] : vector<24x8xf32> to vector<24xf32>
    %82 = vector.shape_cast %81 : vector<24xf32> to vector<24x1xf32>
    %cst_31 = arith.constant -1.000000e+30 : f32
    %83 = vector.shape_cast %82 : vector<24x1xf32> to vector<24x1xf32>
    %84 = vector.broadcast %83 : vector<24x1xf32> to vector<24x12xf32>
    %85 = vector.broadcast %cst_31 : f32 to vector<24x12xf32>
    %86 = arith.select %8, %84, %85 : vector<24x12xi1>, vector<24x12xf32>
    %cst_32 = arith.constant dense<0xFF800000> : vector<12xf32>
    %87 = vector.multi_reduction <maximumf>, %86, %cst_32 [0] : vector<24x12xf32> to vector<12xf32>
    %88 = vector.shape_cast %87 : vector<12xf32> to vector<1x12xf32>
    %89 = vector.broadcast %88 : vector<1x12xf32> to vector<24x12xf32>
    %90 = arith.mulf %10, %89 : vector<24x12xf32>
    %cst_33 = arith.constant dense<0.000000e+00> : vector<24xf32>
    %91 = vector.multi_reduction <add>, %90, %cst_33 [1] : vector<24x12xf32> to vector<24xf32>
    %92 = vector.shape_cast %91 : vector<24xf32> to vector<24x1xf32>
    %93 = arith.subf %82, %92 : vector<24x1xf32>
    %94 = math.exp %93 : vector<24x1xf32>
    %95 = vector.extract_strided_slice %38 {offsets = [2, 0], sizes = [1, 32], strides = [1, 1]} : vector<4x32xf32> to vector<1x32xf32>
    %96 = vector.broadcast %94 : vector<24x1xf32> to vector<24x32xf32>
    %97 = vector.broadcast %95 : vector<1x32xf32> to vector<24x32xf32>
    %98 = arith.mulf %96, %97 : vector<24x32xf32>
    %99 = arith.addf %79, %98 : vector<24x32xf32>
    %100 = vector.extract_strided_slice %37 {offsets = [0, 24], sizes = [24, 8], strides = [1, 1]} : vector<24x32xf32> to vector<24x8xf32>
    %cst_34 = arith.constant dense<0.000000e+00> : vector<24xf32>
    %101 = vector.multi_reduction <add>, %100, %cst_34 [1] : vector<24x8xf32> to vector<24xf32>
    %102 = vector.shape_cast %101 : vector<24xf32> to vector<24x1xf32>
    %cst_35 = arith.constant -1.000000e+30 : f32
    %103 = vector.shape_cast %102 : vector<24x1xf32> to vector<24x1xf32>
    %104 = vector.broadcast %103 : vector<24x1xf32> to vector<24x12xf32>
    %105 = vector.broadcast %cst_35 : f32 to vector<24x12xf32>
    %106 = arith.select %8, %104, %105 : vector<24x12xi1>, vector<24x12xf32>
    %cst_36 = arith.constant dense<0xFF800000> : vector<12xf32>
    %107 = vector.multi_reduction <maximumf>, %106, %cst_36 [0] : vector<24x12xf32> to vector<12xf32>
    %108 = vector.shape_cast %107 : vector<12xf32> to vector<1x12xf32>
    %109 = vector.broadcast %108 : vector<1x12xf32> to vector<24x12xf32>
    %110 = arith.mulf %10, %109 : vector<24x12xf32>
    %cst_37 = arith.constant dense<0.000000e+00> : vector<24xf32>
    %111 = vector.multi_reduction <add>, %110, %cst_37 [1] : vector<24x12xf32> to vector<24xf32>
    %112 = vector.shape_cast %111 : vector<24xf32> to vector<24x1xf32>
    %113 = arith.subf %102, %112 : vector<24x1xf32>
    %114 = math.exp %113 : vector<24x1xf32>
    %115 = vector.extract_strided_slice %38 {offsets = [3, 0], sizes = [1, 32], strides = [1, 1]} : vector<4x32xf32> to vector<1x32xf32>
    %116 = vector.broadcast %114 : vector<24x1xf32> to vector<24x32xf32>
    %117 = vector.broadcast %115 : vector<1x32xf32> to vector<24x32xf32>
    %118 = arith.mulf %116, %117 : vector<24x32xf32>
    %119 = arith.addf %99, %118 : vector<24x32xf32>
    %120 = arith.mulf %119, %36 : vector<24x32xf32>
    %cst_38 = arith.constant dense<0.000000e+00> : vector<12x32xf32>
    %121 = tpu.matmul %16, %120, %cst_38 {dimension_numbers = #tpu.dot_dimension_numbers<[1], [0], [0], [1], [0, 0, 1, 1], [], []>} : vector<12x24xf32>, vector<24x32xf32>, vector<12x32xf32> -> vector<12x32xf32>
    %cst_39 = arith.constant dense<0.000000e+00> : vector<12x32xf32>
    %122 = tpu.matmul %16, %119, %cst_39 {dimension_numbers = #tpu.dot_dimension_numbers<[1], [0], [0], [1], [0, 0, 1, 1], [], []>} : vector<12x24xf32>, vector<24x32xf32>, vector<12x32xf32> -> vector<12x32xf32>
    %cst_40 = arith.constant 0.000000e+00 : f32
    %123 = vector.broadcast %cst_40 : f32 to vector<12x32xf32>
    %124 = arith.cmpf oeq, %122, %123 : vector<12x32xf32>
    %cst_41 = arith.constant 1.000000e+00 : f32
    %125 = vector.broadcast %cst_41 : f32 to vector<12x32xf32>
    %126 = arith.select %124, %125, %122 : vector<12x32xi1>, vector<12x32xf32>
    %127 = arith.divf %121, %126 : vector<12x32xf32>
    %128 = arith.addf %127, %27 : vector<12x32xf32>
    %c0_42 = arith.constant 0 : index
    %c0_43 = arith.constant 0 : index
    %129 = vector.load %arg10[%c0_42, %c0_43] : memref<1x32xf32, #tpu.memory_space<vmem>>, vector<1x32xf32>
    %c0_44 = arith.constant 0 : index
    %c0_45 = arith.constant 0 : index
    %130 = vector.load %arg11[%c0_44, %c0_45] : memref<1x32xf32, #tpu.memory_space<vmem>>, vector<1x32xf32>
    %cst_46 = arith.constant dense<0.000000e+00> : vector<32xf32>
    %131 = vector.multi_reduction <add>, %128, %cst_46 [0] : vector<12x32xf32> to vector<32xf32>
    %132 = vector.shape_cast %131 : vector<32xf32> to vector<1x32xf32>
    %cst_47 = arith.constant 1.200000e+01 : f32
    %133 = vector.broadcast %cst_47 : f32 to vector<1x32xf32>
    %134 = arith.divf %132, %133 : vector<1x32xf32>
    %135 = vector.broadcast %134 : vector<1x32xf32> to vector<12x32xf32>
    %136 = arith.subf %128, %135 : vector<12x32xf32>
    %137 = arith.mulf %136, %136 : vector<12x32xf32>
    %cst_48 = arith.constant dense<0.000000e+00> : vector<32xf32>
    %138 = vector.multi_reduction <add>, %137, %cst_48 [0] : vector<12x32xf32> to vector<32xf32>
    %139 = vector.shape_cast %138 : vector<32xf32> to vector<1x32xf32>
    %cst_49 = arith.constant 1.200000e+01 : f32
    %140 = vector.broadcast %cst_49 : f32 to vector<1x32xf32>
    %141 = arith.divf %139, %140 : vector<1x32xf32>
    %142 = vector.broadcast %134 : vector<1x32xf32> to vector<12x32xf32>
    %143 = arith.subf %128, %142 : vector<12x32xf32>
    %cst_50 = arith.constant 9.99999974E-6 : f32
    %144 = vector.broadcast %cst_50 : f32 to vector<1x32xf32>
    %145 = arith.addf %141, %144 : vector<1x32xf32>
    %146 = math.rsqrt %145 : vector<1x32xf32>
    %147 = vector.broadcast %146 : vector<1x32xf32> to vector<12x32xf32>
    %148 = arith.mulf %143, %147 : vector<12x32xf32>
    %149 = vector.broadcast %129 : vector<1x32xf32> to vector<12x32xf32>
    %150 = arith.mulf %148, %149 : vector<12x32xf32>
    %151 = vector.broadcast %130 : vector<1x32xf32> to vector<12x32xf32>
    %152 = arith.addf %150, %151 : vector<12x32xf32>
    %153 = arith.truncf %152 : vector<12x32xf32> to vector<12x32xbf16>
    %c0_51 = arith.constant 0 : index
    %c0_52 = arith.constant 0 : index
    %154 = vector.load %arg14[%c0_51, %c0_52] : memref<32x64xbf16, #tpu.memory_space<vmem>>, vector<32x64xbf16>
    %cst_53 = arith.constant dense<0.000000e+00> : vector<12x64xf32>
    %155 = tpu.matmul %153, %154, %cst_53 {dimension_numbers = #tpu.dot_dimension_numbers<[1], [0], [0], [1], [0, 0, 1, 1], [], []>} : vector<12x32xbf16>, vector<32x64xbf16>, vector<12x64xf32> -> vector<12x64xf32>
    %c0_54 = arith.constant 0 : index
    %c0_55 = arith.constant 0 : index
    %156 = vector.load %arg15[%c0_54, %c0_55] : memref<1x64xf32, #tpu.memory_space<vmem>>, vector<1x64xf32>
    %157 = vector.broadcast %156 : vector<1x64xf32> to vector<12x64xf32>
    %158 = arith.addf %155, %157 : vector<12x64xf32>
    %cst_56 = arith.constant 5.000000e-01 : f32
    %159 = vector.broadcast %cst_56 : f32 to vector<12x64xf32>
    %160 = arith.mulf %159, %158 : vector<12x64xf32>
    %cst_57 = arith.constant 0.707106769 : f32
    %161 = vector.broadcast %cst_57 : f32 to vector<12x64xf32>
    %162 = arith.mulf %158, %161 : vector<12x64xf32>
    %163 = math.erf %162 : vector<12x64xf32>
    %cst_58 = arith.constant 1.000000e+00 : f32
    %164 = vector.broadcast %cst_58 : f32 to vector<12x64xf32>
    %165 = arith.addf %164, %163 : vector<12x64xf32>
    %166 = arith.mulf %160, %165 : vector<12x64xf32>
    %167 = arith.truncf %166 : vector<12x64xf32> to vector<12x64xbf16>
    %c0_59 = arith.constant 0 : index
    %c0_60 = arith.constant 0 : index
    %168 = vector.load %arg16[%c0_59, %c0_60] : memref<64x32xbf16, #tpu.memory_space<vmem>>, vector<64x32xbf16>
    %cst_61 = arith.constant dense<0.000000e+00> : vector<12x32xf32>
    %169 = tpu.matmul %167, %168, %cst_61 {dimension_numbers = #tpu.dot_dimension_numbers<[1], [0], [0], [1], [0, 0, 1, 1], [], []>} : vector<12x64xbf16>, vector<64x32xbf16>, vector<12x32xf32> -> vector<12x32xf32>
    %c0_62 = arith.constant 0 : index
    %c0_63 = arith.constant 0 : index
    %170 = vector.load %arg17[%c0_62, %c0_63] : memref<1x32xf32, #tpu.memory_space<vmem>>, vector<1x32xf32>
    %171 = vector.broadcast %170 : vector<1x32xf32> to vector<12x32xf32>
    %172 = arith.addf %169, %171 : vector<12x32xf32>
    %173 = arith.addf %172, %152 : vector<12x32xf32>
    %c0_64 = arith.constant 0 : index
    %c0_65 = arith.constant 0 : index
    %174 = vector.load %arg12[%c0_64, %c0_65] : memref<1x32xf32, #tpu.memory_space<vmem>>, vector<1x32xf32>
    %c0_66 = arith.constant 0 : index
    %c0_67 = arith.constant 0 : index
    %175 = vector.load %arg13[%c0_66, %c0_67] : memref<1x32xf32, #tpu.memory_space<vmem>>, vector<1x32xf32>
    %cst_68 = arith.constant dense<0.000000e+00> : vector<32xf32>
    %176 = vector.multi_reduction <add>, %173, %cst_68 [0] : vector<12x32xf32> to vector<32xf32>
    %177 = vector.shape_cast %176 : vector<32xf32> to vector<1x32xf32>
    %cst_69 = arith.constant 1.200000e+01 : f32
    %178 = vector.broadcast %cst_69 : f32 to vector<1x32xf32>
    %179 = arith.divf %177, %178 : vector<1x32xf32>
    %180 = vector.broadcast %179 : vector<1x32xf32> to vector<12x32xf32>
    %181 = arith.subf %173, %180 : vector<12x32xf32>
    %182 = arith.mulf %181, %181 : vector<12x32xf32>
    %cst_70 = arith.constant dense<0.000000e+00> : vector<32xf32>
    %183 = vector.multi_reduction <add>, %182, %cst_70 [0] : vector<12x32xf32> to vector<32xf32>
    %184 = vector.shape_cast %183 : vector<32xf32> to vector<1x32xf32>
    %cst_71 = arith.constant 1.200000e+01 : f32
    %185 = vector.broadcast %cst_71 : f32 to vector<1x32xf32>
    %186 = arith.divf %184, %185 : vector<1x32xf32>
    %187 = vector.broadcast %179 : vector<1x32xf32> to vector<12x32xf32>
    %188 = arith.subf %173, %187 : vector<12x32xf32>
    %cst_72 = arith.constant 9.99999974E-6 : f32
    %189 = vector.broadcast %cst_72 : f32 to vector<1x32xf32>
    %190 = arith.addf %186, %189 : vector<1x32xf32>
    %191 = math.rsqrt %190 : vector<1x32xf32>
    %192 = vector.broadcast %191 : vector<1x32xf32> to vector<12x32xf32>
    %193 = arith.mulf %188, %192 : vector<12x32xf32>
    %194 = vector.broadcast %174 : vector<1x32xf32> to vector<12x32xf32>
    %195 = arith.mulf %193, %194 : vector<12x32xf32>
    %196 = vector.broadcast %175 : vector<1x32xf32> to vector<12x32xf32>
    %197 = arith.addf %195, %196 : vector<12x32xf32>
    %cst_73 = arith.constant 5.000000e-01 : f32
    %198 = vector.broadcast %cst_73 : f32 to vector<12x32xf32>
    %199 = arith.mulf %198, %197 : vector<12x32xf32>
    %cst_74 = arith.constant 0.707106769 : f32
    %200 = vector.broadcast %cst_74 : f32 to vector<12x32xf32>
    %201 = arith.mulf %197, %200 : vector<12x32xf32>
    %202 = math.erf %201 : vector<12x32xf32>
    %cst_75 = arith.constant 1.000000e+00 : f32
    %203 = vector.broadcast %cst_75 : f32 to vector<12x32xf32>
    %204 = arith.addf %203, %202 : vector<12x32xf32>
    %205 = arith.mulf %199, %204 : vector<12x32xf32>
    %c0_76 = arith.constant 0 : index
    %c0_77 = arith.constant 0 : index
    %206 = vector.load %arg26[%c0_76, %c0_77] : memref<12x32xf32, #tpu.memory_space<vmem>>, vector<12x32xf32>
    tpu.vector_store %arg26[%c0_76, %c0_77], %205 {strides = array<i32>} : memref<12x32xf32, #tpu.memory_space<vmem>>, vector<12x32xf32>,
    %207 = arith.truncf %197 : vector<12x32xf32> to vector<12x32xbf16>
    %c0_78 = arith.constant 0 : index
    %c0_79 = arith.constant 0 : index
    %208 = vector.load %arg19[%c0_78, %c0_79] : memref<32x8xbf16, #tpu.memory_space<vmem>>, vector<32x8xbf16>
    %cst_80 = arith.constant dense<0.000000e+00> : vector<12x8xf32>
    %209 = tpu.matmul %207, %208, %cst_80 {dimension_numbers = #tpu.dot_dimension_numbers<[1], [0], [0], [1], [0, 0, 1, 1], [], []>} : vector<12x32xbf16>, vector<32x8xbf16>, vector<12x8xf32> -> vector<12x8xf32>
    %210 = arith.truncf %197 : vector<12x32xf32> to vector<12x32xbf16>
    %c0_81 = arith.constant 0 : index
    %c0_82 = arith.constant 0 : index
    %211 = vector.load %arg20[%c0_81, %c0_82] : memref<32x8xbf16, #tpu.memory_space<vmem>>, vector<32x8xbf16>
    %cst_83 = arith.constant dense<0.000000e+00> : vector<12x8xf32>
    %212 = tpu.matmul %210, %211, %cst_83 {dimension_numbers = #tpu.dot_dimension_numbers<[1], [0], [0], [1], [0, 0, 1, 1], [], []>} : vector<12x32xbf16>, vector<32x8xbf16>, vector<12x8xf32> -> vector<12x8xf32>
    %c0_84 = arith.constant 0 : index
    %c0_85 = arith.constant 0 : index
    %213 = vector.load %arg5[%c0_84, %c0_85] : memref<24x8xf32, #tpu.memory_space<vmem>>, vector<24x8xf32>
    %214 = arith.truncf %213 : vector<24x8xf32> to vector<24x8xbf16>
    %c0_86 = arith.constant 0 : index
    %c0_87 = arith.constant 0 : index
    %215 = vector.load %arg18[%c0_86, %c0_87] : memref<8x8xbf16, #tpu.memory_space<vmem>>, vector<8x8xbf16>
    %cst_88 = arith.constant dense<0.000000e+00> : vector<24x8xf32>
    %216 = tpu.matmul %214, %215, %cst_88 {dimension_numbers = #tpu.dot_dimension_numbers<[1], [0], [0], [1], [0, 0, 1, 1], [], []>} : vector<24x8xbf16>, vector<8x8xbf16>, vector<24x8xf32> -> vector<24x8xf32>
    %cst_89 = arith.constant dense<0.000000e+00> : vector<24x8xf32>
    %217 = tpu.matmul %5, %209, %cst_89 {dimension_numbers = #tpu.dot_dimension_numbers<[1], [0], [0], [1], [0, 0, 1, 1], [], []>} : vector<24x12xf32>, vector<12x8xf32>, vector<24x8xf32> -> vector<24x8xf32>
    %218 = arith.addf %216, %217 : vector<24x8xf32>
    %cst_90 = arith.constant dense<0.000000e+00> : vector<24x8xf32>
    %219 = tpu.matmul %10, %212, %cst_90 {dimension_numbers = #tpu.dot_dimension_numbers<[1], [0], [0], [1], [0, 0, 1, 1], [], []>} : vector<24x12xf32>, vector<12x8xf32>, vector<24x8xf32> -> vector<24x8xf32>
    %220 = arith.addf %218, %219 : vector<24x8xf32>
    %c0_91 = arith.constant 0 : index
    %c0_92 = arith.constant 0 : index
    %221 = vector.load %arg21[%c0_91, %c0_92] : memref<1x8xf32, #tpu.memory_space<vmem>>, vector<1x8xf32>
    %222 = vector.broadcast %221 : vector<1x8xf32> to vector<24x8xf32>
    %223 = arith.addf %220, %222 : vector<24x8xf32>
    %cst_93 = arith.constant 5.000000e-01 : f32
    %224 = vector.broadcast %cst_93 : f32 to vector<24x8xf32>
    %225 = arith.mulf %224, %223 : vector<24x8xf32>
    %cst_94 = arith.constant 0.707106769 : f32
    %226 = vector.broadcast %cst_94 : f32 to vector<24x8xf32>
    %227 = arith.mulf %223, %226 : vector<24x8xf32>
    %228 = math.erf %227 : vector<24x8xf32>
    %cst_95 = arith.constant 1.000000e+00 : f32
    %229 = vector.broadcast %cst_95 : f32 to vector<24x8xf32>
    %230 = arith.addf %229, %228 : vector<24x8xf32>
    %231 = arith.mulf %225, %230 : vector<24x8xf32>
    %232 = arith.truncf %231 : vector<24x8xf32> to vector<24x8xbf16>
    %c0_96 = arith.constant 0 : index
    %c0_97 = arith.constant 0 : index
    %233 = vector.load %arg22[%c0_96, %c0_97] : memref<8x8xbf16, #tpu.memory_space<vmem>>, vector<8x8xbf16>
    %cst_98 = arith.constant dense<0.000000e+00> : vector<24x8xf32>
    %234 = tpu.matmul %232, %233, %cst_98 {dimension_numbers = #tpu.dot_dimension_numbers<[1], [0], [0], [1], [0, 0, 1, 1], [], []>} : vector<24x8xbf16>, vector<8x8xbf16>, vector<24x8xf32> -> vector<24x8xf32>
    %c0_99 = arith.constant 0 : index
    %c0_100 = arith.constant 0 : index
    %235 = vector.load %arg23[%c0_99, %c0_100] : memref<1x8xf32, #tpu.memory_space<vmem>>, vector<1x8xf32>
    %236 = vector.broadcast %235 : vector<1x8xf32> to vector<24x8xf32>
    %237 = arith.addf %234, %236 : vector<24x8xf32>
    %c0_101 = arith.constant 0 : index
    %c0_102 = arith.constant 0 : index
    %238 = vector.load %arg24[%c0_101, %c0_102] : memref<1x8xf32, #tpu.memory_space<vmem>>, vector<1x8xf32>
    %c0_103 = arith.constant 0 : index
    %c0_104 = arith.constant 0 : index
    %239 = vector.load %arg25[%c0_103, %c0_104] : memref<1x8xf32, #tpu.memory_space<vmem>>, vector<1x8xf32>
    %cst_105 = arith.constant dense<0.000000e+00> : vector<8xf32>
    %240 = vector.multi_reduction <add>, %237, %cst_105 [0] : vector<24x8xf32> to vector<8xf32>
    %241 = vector.shape_cast %240 : vector<8xf32> to vector<1x8xf32>
    %cst_106 = arith.constant 2.400000e+01 : f32
    %242 = vector.broadcast %cst_106 : f32 to vector<1x8xf32>
    %243 = arith.divf %241, %242 : vector<1x8xf32>
    %244 = vector.broadcast %243 : vector<1x8xf32> to vector<24x8xf32>
    %245 = arith.subf %237, %244 : vector<24x8xf32>
    %246 = arith.mulf %245, %245 : vector<24x8xf32>
    %cst_107 = arith.constant dense<0.000000e+00> : vector<8xf32>
    %247 = vector.multi_reduction <add>, %246, %cst_107 [0] : vector<24x8xf32> to vector<8xf32>
    %248 = vector.shape_cast %247 : vector<8xf32> to vector<1x8xf32>
    %cst_108 = arith.constant 2.400000e+01 : f32
    %249 = vector.broadcast %cst_108 : f32 to vector<1x8xf32>
    %250 = arith.divf %248, %249 : vector<1x8xf32>
    %251 = vector.broadcast %243 : vector<1x8xf32> to vector<24x8xf32>
    %252 = arith.subf %237, %251 : vector<24x8xf32>
    %cst_109 = arith.constant 9.99999974E-6 : f32
    %253 = vector.broadcast %cst_109 : f32 to vector<1x8xf32>
    %254 = arith.addf %250, %253 : vector<1x8xf32>
    %255 = math.rsqrt %254 : vector<1x8xf32>
    %256 = vector.broadcast %255 : vector<1x8xf32> to vector<24x8xf32>
    %257 = arith.mulf %252, %256 : vector<24x8xf32>
    %258 = vector.broadcast %238 : vector<1x8xf32> to vector<24x8xf32>
    %259 = arith.mulf %257, %258 : vector<24x8xf32>
    %260 = vector.broadcast %239 : vector<1x8xf32> to vector<24x8xf32>
    %261 = arith.addf %259, %260 : vector<24x8xf32>
    %cst_110 = arith.constant 5.000000e-01 : f32
    %262 = vector.broadcast %cst_110 : f32 to vector<24x8xf32>
    %263 = arith.mulf %262, %261 : vector<24x8xf32>
    %cst_111 = arith.constant 0.707106769 : f32
    %264 = vector.broadcast %cst_111 : f32 to vector<24x8xf32>
    %265 = arith.mulf %261, %264 : vector<24x8xf32>
    %266 = math.erf %265 : vector<24x8xf32>
    %cst_112 = arith.constant 1.000000e+00 : f32
    %267 = vector.broadcast %cst_112 : f32 to vector<24x8xf32>
    %268 = arith.addf %267, %266 : vector<24x8xf32>
    %269 = arith.mulf %263, %268 : vector<24x8xf32>
    %c0_113 = arith.constant 0 : index
    %c0_114 = arith.constant 0 : index
    %270 = vector.load %arg27[%c0_113, %c0_114] : memref<24x8xf32, #tpu.memory_space<vmem>>, vector<24x8xf32>
    tpu.vector_store %arg27[%c0_113, %c0_114], %269 {strides = array<i32>} : memref<24x8xf32, #tpu.memory_space<vmem>>, vector<24x8xf32>,
    return
  }
  func.func @transform_0(%arg0: i32) -> (i32, i32) {
    %c0_i32 = arith.constant 0 : i32
    %c0_i32_0 = arith.constant 0 : i32
    %c0_i32_1 = arith.constant 0 : i32
    return %c0_i32, %c0_i32_0 : i32, i32
  }
  func.func @transform_1(%arg0: i32) -> (i32, i32) {
    %c0_i32 = arith.constant 0 : i32
    %c0_i32_0 = arith.constant 0 : i32
    %c0_i32_1 = arith.constant 0 : i32
    return %c0_i32, %c0_i32_0 : i32, i32
  }
  func.func @transform_2(%arg0: i32) -> (i32, i32) {
    %c0_i32 = arith.constant 0 : i32
    %c0_i32_0 = arith.constant 0 : i32
    %c0_i32_1 = arith.constant 0 : i32
    return %c0_i32, %c0_i32_0 : i32, i32
  }
  func.func @transform_3(%arg0: i32) -> (i32, i32) {
    %c0_i32 = arith.constant 0 : i32
    %c0_i32_0 = arith.constant 0 : i32
    %c0_i32_1 = arith.constant 0 : i32
    return %c0_i32, %c0_i32_0 : i32, i32
  }
  func.func @transform_4(%arg0: i32) -> (i32, i32) {
    %c0_i32 = arith.constant 0 : i32
    %c0_i32_0 = arith.constant 0 : i32
    %c0_i32_1 = arith.constant 0 : i32
    return %c0_i32, %c0_i32_0 : i32, i32
  }
  func.func @transform_5(%arg0: i32) -> (i32, i32) {
    %c0_i32 = arith.constant 0 : i32
    %c0_i32_0 = arith.constant 0 : i32
    %c0_i32_1 = arith.constant 0 : i32
    return %c0_i32, %c0_i32_0 : i32, i32
  }
  func.func @transform_6(%arg0: i32) -> (i32, i32) {
    %c0_i32 = arith.constant 0 : i32
    %c0_i32_0 = arith.constant 0 : i32
    %c0_i32_1 = arith.constant 0 : i32
    return %c0_i32, %c0_i32_0 : i32, i32
  }
  func.func @transform_7(%arg0: i32) -> (i32, i32) {
    %c0_i32 = arith.constant 0 : i32
    %c0_i32_0 = arith.constant 0 : i32
    %c0_i32_1 = arith.constant 0 : i32
    return %c0_i32, %c0_i32_0 : i32, i32
  }
  func.func @transform_8(%arg0: i32) -> (i32, i32) {
    %c0_i32 = arith.constant 0 : i32
    %c0_i32_0 = arith.constant 0 : i32
    %c0_i32_1 = arith.constant 0 : i32
    return %c0_i32, %c0_i32_0 : i32, i32
  }
  func.func @transform_9(%arg0: i32) -> (i32, i32) {
    %c0_i32 = arith.constant 0 : i32
    %c0_i32_0 = arith.constant 0 : i32
    %c0_i32_1 = arith.constant 0 : i32
    return %c0_i32, %c0_i32_0 : i32, i32
  }
  func.func @transform_10(%arg0: i32) -> (i32, i32) {
    %c0_i32 = arith.constant 0 : i32
    %c0_i32_0 = arith.constant 0 : i32
    %c0_i32_1 = arith.constant 0 : i32
    return %c0_i32, %c0_i32_0 : i32, i32
  }
  func.func @transform_11(%arg0: i32) -> (i32, i32) {
    %c0_i32 = arith.constant 0 : i32
    %c0_i32_0 = arith.constant 0 : i32
    %c0_i32_1 = arith.constant 0 : i32
    return %c0_i32, %c0_i32_0 : i32, i32
  }
  func.func @transform_12(%arg0: i32) -> (i32, i32) {
    %c0_i32 = arith.constant 0 : i32
    %c0_i32_0 = arith.constant 0 : i32
    %c0_i32_1 = arith.constant 0 : i32
    return %c0_i32, %c0_i32_0 : i32, i32
  }
  func.func @transform_13(%arg0: i32) -> (i32, i32) {
    %c0_i32 = arith.constant 0 : i32
    %c0_i32_0 = arith.constant 0 : i32
    %c0_i32_1 = arith.constant 0 : i32
    return %c0_i32, %c0_i32_0 : i32, i32
  }
  func.func @transform_14(%arg0: i32) -> (i32, i32) {
    %c0_i32 = arith.constant 0 : i32
    %c0_i32_0 = arith.constant 0 : i32
    %c0_i32_1 = arith.constant 0 : i32
    return %c0_i32, %c0_i32_0 : i32, i32
  }
  func.func @transform_15(%arg0: i32) -> (i32, i32) {
    %c0_i32 = arith.constant 0 : i32
    %c0_i32_0 = arith.constant 0 : i32
    %c0_i32_1 = arith.constant 0 : i32
    return %c0_i32, %c0_i32_0 : i32, i32
  }
  func.func @transform_16(%arg0: i32) -> (i32, i32) {
    %c0_i32 = arith.constant 0 : i32
    %c0_i32_0 = arith.constant 0 : i32
    %c0_i32_1 = arith.constant 0 : i32
    return %c0_i32, %c0_i32_0 : i32, i32
  }
  func.func @transform_17(%arg0: i32) -> (i32, i32) {
    %c0_i32 = arith.constant 0 : i32
    %c0_i32_0 = arith.constant 0 : i32
    %c0_i32_1 = arith.constant 0 : i32
    return %c0_i32, %c0_i32_0 : i32, i32
  }
  func.func @transform_18(%arg0: i32) -> (i32, i32) {
    %c0_i32 = arith.constant 0 : i32
    %c0_i32_0 = arith.constant 0 : i32
    %c0_i32_1 = arith.constant 0 : i32
    return %c0_i32, %c0_i32_0 : i32, i32
  }
  func.func @transform_19(%arg0: i32) -> (i32, i32) {
    %c0_i32 = arith.constant 0 : i32
    %c0_i32_0 = arith.constant 0 : i32
    %c0_i32_1 = arith.constant 0 : i32
    return %c0_i32, %c0_i32_0 : i32, i32
  }
  func.func @transform_20(%arg0: i32) -> (i32, i32) {
    %c0_i32 = arith.constant 0 : i32
    %c0_i32_0 = arith.constant 0 : i32
    %c0_i32_1 = arith.constant 0 : i32
    return %c0_i32, %c0_i32_0 : i32, i32
  }
  func.func @transform_21(%arg0: i32) -> (i32, i32) {
    %c0_i32 = arith.constant 0 : i32
    %c0_i32_0 = arith.constant 0 : i32
    %c0_i32_1 = arith.constant 0 : i32
    return %c0_i32, %c0_i32_0 : i32, i32
  }
  func.func @transform_22(%arg0: i32) -> (i32, i32) {
    %c0_i32 = arith.constant 0 : i32
    %c0_i32_0 = arith.constant 0 : i32
    %c0_i32_1 = arith.constant 0 : i32
    return %c0_i32, %c0_i32_0 : i32, i32
  }
  func.func @transform_23(%arg0: i32) -> (i32, i32) {
    %c0_i32 = arith.constant 0 : i32
    %c0_i32_0 = arith.constant 0 : i32
    %c0_i32_1 = arith.constant 0 : i32
    return %c0_i32, %c0_i32_0 : i32, i32
  }
  func.func @transform_24(%arg0: i32) -> (i32, i32) {
    %c0_i32 = arith.constant 0 : i32
    %c0_i32_0 = arith.constant 0 : i32
    %c0_i32_1 = arith.constant 0 : i32
    return %c0_i32, %c0_i32_0 : i32, i32
  }
  func.func @transform_25(%arg0: i32) -> (i32, i32) {
    %c0_i32 = arith.constant 0 : i32
    %c0_i32_0 = arith.constant 0 : i32
    %c0_i32_1 = arith.constant 0 : i32
    return %c0_i32, %c0_i32_0 : i32, i32
  }
  func.func @transform_26(%arg0: i32) -> (i32, i32) {
    %c0_i32 = arith.constant 0 : i32
    %c0_i32_0 = arith.constant 0 : i32
    %c0_i32_1 = arith.constant 0 : i32
    return %c0_i32, %c0_i32_0 : i32, i32
  }
}

</mosaic_0001>

<llo_original>
// kernel: tpu_custom_call.1
$region0: #{tpu_custom_call.1}
  #allocation0 [shape = 'u32[]', space=smem, size = 0x4, offset = 0x4, fixed_abs, tag = 'smem constant byte address 0x4 - core index']
  #allocation1 [shape = 'u32[144,128]{1,0:T(1,128)}', space=vmem, size = 0x12000, scoped, tag = 'internal scratch']
  %s0 = inlined_call_operand.vmem [shape: s32[24,1], index: 0, kind: input, shape index: {}]
  %s1 = inlined_call_operand.vmem [shape: s32[24,1], index: 1, kind: input, shape index: {}]
  %s2 = inlined_call_operand.vmem [shape: s32[1,24], index: 2, kind: input, shape index: {}]
  %s3 = inlined_call_operand.vmem [shape: f32[12,16], index: 3, kind: input, shape index: {}]
  %s4 = inlined_call_operand.vmem [shape: f32[24,8], index: 4, kind: input, shape index: {}]
  %s5 = inlined_call_operand.vmem [shape: bf16[16,128], index: 5, kind: input, shape index: {}]
  %s6 = inlined_call_operand.vmem [shape: f32[1,128], index: 6, kind: input, shape index: {}]
  %s7 = inlined_call_operand.vmem [shape: bf16[8,32], index: 7, kind: input, shape index: {}]
  %s8 = inlined_call_operand.vmem [shape: f32[4,32], index: 8, kind: input, shape index: {}]
  %s9 = inlined_call_operand.vmem [shape: f32[1,32], index: 9, kind: input, shape index: {}]
  %s10 = inlined_call_operand.vmem [shape: f32[1,32], index: 10, kind: input, shape index: {}]
  %s11 = inlined_call_operand.vmem [shape: f32[1,32], index: 11, kind: input, shape index: {}]
  %s12 = inlined_call_operand.vmem [shape: f32[1,32], index: 12, kind: input, shape index: {}]
  %s13 = inlined_call_operand.vmem [shape: bf16[32,64], index: 13, kind: input, shape index: {}]
  %s14 = inlined_call_operand.vmem [shape: f32[1,64], index: 14, kind: input, shape index: {}]
  %s15 = inlined_call_operand.vmem [shape: bf16[64,32], index: 15, kind: input, shape index: {}]
  %s16 = inlined_call_operand.vmem [shape: f32[1,32], index: 16, kind: input, shape index: {}]
  %s17 = inlined_call_operand.vmem [shape: bf16[8,8], index: 17, kind: input, shape index: {}]
  %s18 = inlined_call_operand.vmem [shape: bf16[32,8], index: 18, kind: input, shape index: {}]
  %s19 = inlined_call_operand.vmem [shape: bf16[32,8], index: 19, kind: input, shape index: {}]
  %s20 = inlined_call_operand.vmem [shape: f32[1,8], index: 20, kind: input, shape index: {}]
  %s21 = inlined_call_operand.vmem [shape: bf16[8,8], index: 21, kind: input, shape index: {}]
  %s22 = inlined_call_operand.vmem [shape: f32[1,8], index: 22, kind: input, shape index: {}]
  %s23 = inlined_call_operand.vmem [shape: f32[1,8], index: 23, kind: input, shape index: {}]
  %s24 = inlined_call_operand.vmem [shape: f32[1,8], index: 24, kind: input, shape index: {}]
  %s25 = inlined_call_operand.hbm [shape: f32[12,32], index: 25, kind: output, shape index: {0}]
  %s26 = inlined_call_operand.vmem [shape: f32[24,8], index: 26, kind: output, shape index: {1}]
  %27 = xla_tuple %s25, %s26
  %s28 = sld [smem:[#allocation0]]
  $region118: #{tpu_custom_call.1} parent=0
    _
  %s30 = ssub.s32 1, %s28
  %s31 = scalar_select 0, %s30, %s28
  $region1: #{tpu_custom_call.1} parent=0
    #allocation2 [shape = 'u8[8192]{0}', space=vmem, size = 0x2000, scoped, tag = 'output window, operand 0, single buffered']
    #allocation3 [shape = 's32[1]{0}', space=sflag, size = 0x4, scoped, tag = 'scoped memory for tpu_custom_call.1']
    %32 = vsyncpa [#allocation3], 0
    // Predicated region
    $region2: #{tpu_custom_call.1} parent=1 // pred_check
      _
    $region3: #{tpu_custom_call.1} parent=1 // pred_check_branch
      %34 = sbr.rel (0) target = $region5
    $region4: #{tpu_custom_call.1} parent=1 // pred_region
      _
    $region5: #{tpu_custom_call.1} parent=1 // pred_fallthru
      _
    // Predicated region
    $region6: #{tpu_custom_call.1} parent=1 // pred_check
      _
    $region7: #{tpu_custom_call.1} parent=1 // pred_check_branch
      %36 = sbr.rel (0) target = $region9
    $region8: #{tpu_custom_call.1} parent=1 // pred_region
      _
    $region9: #{tpu_custom_call.1} parent=1 // pred_fallthru
      _
    // Predicated region
    $region10: #{tpu_custom_call.1} parent=1 // pred_check
      _
    $region11: #{tpu_custom_call.1} parent=1 // pred_check_branch
      %38 = sbr.rel (0) target = $region13
    $region12: #{tpu_custom_call.1} parent=1 // pred_region
      _
    $region13: #{tpu_custom_call.1} parent=1 // pred_fallthru
      _
    // Predicated region
    $region14: #{tpu_custom_call.1} parent=1 // pred_check
      _
    $region15: #{tpu_custom_call.1} parent=1 // pred_check_branch
      %40 = sbr.rel (0) target = $region17
    $region16: #{tpu_custom_call.1} parent=1 // pred_region
      _
    $region17: #{tpu_custom_call.1} parent=1 // pred_fallthru
      _
    // Predicated region
    $region18: #{tpu_custom_call.1} parent=1 // pred_check
      _
    $region19: #{tpu_custom_call.1} parent=1 // pred_check_branch
      %42 = sbr.rel (0) target = $region21
    $region20: #{tpu_custom_call.1} parent=1 // pred_region
      _
    $region21: #{tpu_custom_call.1} parent=1 // pred_fallthru
      _
    // Predicated region
    $region22: #{tpu_custom_call.1} parent=1 // pred_check
      _
    $region23: #{tpu_custom_call.1} parent=1 // pred_check_branch
      %44 = sbr.rel (0) target = $region25
    $region24: #{tpu_custom_call.1} parent=1 // pred_region
      _
    $region25: #{tpu_custom_call.1} parent=1 // pred_fallthru
      _
    // Predicated region
    $region26: #{tpu_custom_call.1} parent=1 // pred_check
      _
    $region27: #{tpu_custom_call.1} parent=1 // pred_check_branch
      %46 = sbr.rel (0) target = $region29
    $region28: #{tpu_custom_call.1} parent=1 // pred_region
      _
    $region29: #{tpu_custom_call.1} parent=1 // pred_fallthru
      _
    // Predicated region
    $region30: #{tpu_custom_call.1} parent=1 // pred_check
      _
    $region31: #{tpu_custom_call.1} parent=1 // pred_check_branch
      %48 = sbr.rel (0) target = $region33
    $region32: #{tpu_custom_call.1} parent=1 // pred_region
      _
    $region33: #{tpu_custom_call.1} parent=1 // pred_fallthru
      _
    // Predicated region
    $region34: #{tpu_custom_call.1} parent=1 // pred_check
      _
    $region35: #{tpu_custom_call.1} parent=1 // pred_check_branch
      %50 = sbr.rel (0) target = $region37
    $region36: #{tpu_custom_call.1} parent=1 // pred_region
      _
    $region37: #{tpu_custom_call.1} parent=1 // pred_fallthru
      _
    // Predicated region
    $region38: #{tpu_custom_call.1} parent=1 // pred_check
      _
    $region39: #{tpu_custom_call.1} parent=1 // pred_check_branch
      %52 = sbr.rel (0) target = $region41
    $region40: #{tpu_custom_call.1} parent=1 // pred_region
      _
    $region41: #{tpu_custom_call.1} parent=1 // pred_fallthru
      _
    // Predicated region
    $region42: #{tpu_custom_call.1} parent=1 // pred_check
      _
    $region43: #{tpu_custom_call.1} parent=1 // pred_check_branch
      %54 = sbr.rel (0) target = $region45
    $region44: #{tpu_custom_call.1} parent=1 // pred_region
      _
    $region45: #{tpu_custom_call.1} parent=1 // pred_fallthru
      _
    // Predicated region
    $region46: #{tpu_custom_call.1} parent=1 // pred_check
      _
    $region47: #{tpu_custom_call.1} parent=1 // pred_check_branch
      %56 = sbr.rel (0) target = $region49
    $region48: #{tpu_custom_call.1} parent=1 // pred_region
      _
    $region49: #{tpu_custom_call.1} parent=1 // pred_fallthru
      _
    // Predicated region
    $region50: #{tpu_custom_call.1} parent=1 // pred_check
      _
    $region51: #{tpu_custom_call.1} parent=1 // pred_check_branch
      %58 = sbr.rel (0) target = $region53
    $region52: #{tpu_custom_call.1} parent=1 // pred_region
      _
    $region53: #{tpu_custom_call.1} parent=1 // pred_fallthru
      _
    // Predicated region
    $region54: #{tpu_custom_call.1} parent=1 // pred_check
      _
    $region55: #{tpu_custom_call.1} parent=1 // pred_check_branch
      %60 = sbr.rel (0) target = $region57
    $region56: #{tpu_custom_call.1} parent=1 // pred_region
      _
    $region57: #{tpu_custom_call.1} parent=1 // pred_fallthru
      _
    // Predicated region
    $region58: #{tpu_custom_call.1} parent=1 // pred_check
      _
    $region59: #{tpu_custom_call.1} parent=1 // pred_check_branch
      %62 = sbr.rel (0) target = $region61
    $region60: #{tpu_custom_call.1} parent=1 // pred_region
      _
    $region61: #{tpu_custom_call.1} parent=1 // pred_fallthru
      _
    // Predicated region
    $region62: #{tpu_custom_call.1} parent=1 // pred_check
      _
    $region63: #{tpu_custom_call.1} parent=1 // pred_check_branch
      %64 = sbr.rel (0) target = $region65
    $region64: #{tpu_custom_call.1} parent=1 // pred_region
      _
    $region65: #{tpu_custom_call.1} parent=1 // pred_fallthru
      _
    // Predicated region
    $region66: #{tpu_custom_call.1} parent=1 // pred_check
      _
    $region67: #{tpu_custom_call.1} parent=1 // pred_check_branch
      %66 = sbr.rel (0) target = $region69
    $region68: #{tpu_custom_call.1} parent=1 // pred_region
      _
    $region69: #{tpu_custom_call.1} parent=1 // pred_fallthru
      _
    // Predicated region
    $region70: #{tpu_custom_call.1} parent=1 // pred_check
      _
    $region71: #{tpu_custom_call.1} parent=1 // pred_check_branch
      %68 = sbr.rel (0) target = $region73
    $region72: #{tpu_custom_call.1} parent=1 // pred_region
      _
    $region73: #{tpu_custom_call.1} parent=1 // pred_fallthru
      _
    // Predicated region
    $region74: #{tpu_custom_call.1} parent=1 // pred_check
      _
    $region75: #{tpu_custom_call.1} parent=1 // pred_check_branch
      %70 = sbr.rel (0) target = $region77
    $region76: #{tpu_custom_call.1} parent=1 // pred_region
      _
    $region77: #{tpu_custom_call.1} parent=1 // pred_fallthru
      _
    // Predicated region
    $region78: #{tpu_custom_call.1} parent=1 // pred_check
      _
    $region79: #{tpu_custom_call.1} parent=1 // pred_check_branch
      %72 = sbr.rel (0) target = $region81
    $region80: #{tpu_custom_call.1} parent=1 // pred_region
      _
    $region81: #{tpu_custom_call.1} parent=1 // pred_fallthru
      _
    // Predicated region
    $region82: #{tpu_custom_call.1} parent=1 // pred_check
      _
    $region83: #{tpu_custom_call.1} parent=1 // pred_check_branch
      %74 = sbr.rel (0) target = $region85
    $region84: #{tpu_custom_call.1} parent=1 // pred_region
      _
    $region85: #{tpu_custom_call.1} parent=1 // pred_fallthru
      _
    // Predicated region
    $region86: #{tpu_custom_call.1} parent=1 // pred_check
      _
    $region87: #{tpu_custom_call.1} parent=1 // pred_check_branch
      %76 = sbr.rel (0) target = $region89
    $region88: #{tpu_custom_call.1} parent=1 // pred_region
      _
    $region89: #{tpu_custom_call.1} parent=1 // pred_fallthru
      _
    // Predicated region
    $region90: #{tpu_custom_call.1} parent=1 // pred_check
      _
    $region91: #{tpu_custom_call.1} parent=1 // pred_check_branch
      %78 = sbr.rel (0) target = $region93
    $region92: #{tpu_custom_call.1} parent=1 // pred_region
      _
    $region93: #{tpu_custom_call.1} parent=1 // pred_fallthru
      _
    // Predicated region
    $region94: #{tpu_custom_call.1} parent=1 // pred_check
      _
    $region95: #{tpu_custom_call.1} parent=1 // pred_check_branch
      %80 = sbr.rel (0) target = $region97
    $region96: #{tpu_custom_call.1} parent=1 // pred_region
      _
    $region97: #{tpu_custom_call.1} parent=1 // pred_fallthru
      _
    // Predicated region
    $region98: #{tpu_custom_call.1} parent=1 // pred_check
      _
    $region99: #{tpu_custom_call.1} parent=1 // pred_check_branch
      %82 = sbr.rel (0) target = $region101
    $region100: #{tpu_custom_call.1} parent=1 // pred_region
      _
    $region101: #{tpu_custom_call.1} parent=1 // pred_fallthru
      _
    %v84 = vlaneseq
    %v85 = vand.u32 %v84, 127
    %v86 = vld [vmem:[%s0] sm:$0xff]
    %v87 = vld [vmem:[%s0 + $0x8] sm:$0xff]
    %v88 = vld [vmem:[%s0 + $0x10] sm:$0xff]
    %89 = vset.pattern.permute.xlu0 0
    %90 = vperm.xlu0 %89, %v86
    %v91 = vpop.permute.xlu0 %90
    %92 = vset.pattern.permute.xlu0 0
    %93 = vperm.xlu0 %92, %v87
    %v94 = vpop.permute.xlu0 %93
    %95 = vset.pattern.permute.xlu0 0
    %96 = vperm.xlu0 %95, %v88
    %v97 = vpop.permute.xlu0 %96
    %vm98 = vcmp.eq.s32.totalorder %v91, %v85
    %vm99 = vcmp.eq.s32.totalorder %v94, %v85
    %vm100 = vcmp.eq.s32.totalorder %v97, %v85
    %v101 = vsel %vm98, 1, 0
    %v102 = vsel %vm99, 1, 0
    %v103 = vsel %vm100, 1, 0
    %v104 = vcvt.s32.f32 %v101
    %v105 = vcvt.s32.f32 %v102
    %v106 = vcvt.s32.f32 %v103
    %v107 = vld [vmem:[%s1] sm:$0xff]
    %v108 = vld [vmem:[%s1 + $0x8] sm:$0xff]
    %v109 = vld [vmem:[%s1 + $0x10] sm:$0xff]
    %110 = vset.pattern.permute.xlu0 0
    %111 = vperm.xlu0 %110, %v107
    %v112 = vpop.permute.xlu0 %111
    %113 = vset.pattern.permute.xlu0 0
    %114 = vperm.xlu0 %113, %v108
    %v115 = vpop.permute.xlu0 %114
    %116 = vset.pattern.permute.xlu0 0
    %117 = vperm.xlu0 %116, %v109
    %v118 = vpop.permute.xlu0 %117
    %vm119 = vcmp.eq.s32.totalorder %v112, %v85
    %vm120 = vcmp.eq.s32.totalorder %v115, %v85
    %vm121 = vcmp.eq.s32.totalorder %v118, %v85
    %v122 = vsel %vm119, 1, 0
    %v123 = vsel %vm120, 1, 0
    %v124 = vsel %vm121, 1, 0
    %v125 = vcvt.s32.f32 %v122
    %v126 = vcvt.s32.f32 %v123
    %v127 = vcvt.s32.f32 %v124
    %v128 = vld [vmem:[%s2] sm:$0x1]
    %v129 = vlaneseq
    %v130 = vshrl.u32 %v129, 7
    %v131 = vsub.s32 0, %v130
    %v132 = vrot.slane %v128, %v131
    %vm133 = vcmp.eq.s32.totalorder %v132, %v85
    %v134 = vsel %vm133, 1, 0
    %v135 = vcvt.s32.f32 %v134
    %v136 = vld [vmem:[%s3] sm:$0xff]
    %v137 = vld [vmem:[%s3 + $0x8] sm:$0xf]
    %v138 = vpack.c.bf16 %v137, %v136
    %v139 = vld [vmem:[%s5] sm:$0xf]
    %v140 = vld [vmem:[%s5 + $0x4] sm:$0xf]
    %v141 = vld [vmem:[%s6] sm:$0x1]
    %v143 = vlaneseq
    %v144 = vshrl.u32 %v143, 7
    %v145 = vsub.s32 0, %v144
    %v146 = vrot.slane %v141, %v145
    %v150 = vunpack.c.l.b16 %v139
    %v151 = vunpack.c.l.b16 %v140
    %v152 = vpack.c.b16 %v151, %v150
    %vm154 = vcmask 130048
    %v156 = vsel %vm154, %v138, 0
    %158 = vmatprep.subr.bf16.mxu0 0
    %159 = vmatpush1.bf16.msra.mxu0 0
    %160 = vmatprep.subr.bf16.mxu0 0
    %161 = vmatpush1.bf16.msra.mxu0 0
    %162 = vmatprep.subr.bf16.mxu0 0
    %163 = vmatpush1.bf16.msra.mxu0 0
    %164 = vmatprep.subr.bf16.mxu0 0
    %165 = vmatpush1.bf16.msra.mxu0 0
    %166 = vmatprep.subr.bf16.mxu0 0
    %167 = vmatpush1.bf16.msra.mxu0 0
    %168 = vmatprep.subr.bf16.mxu0 0
    %169 = vmatpush1.bf16.msra.mxu0 0
    %170 = vmatprep.subr.bf16.mxu0 0
    %171 = vmatpush1.bf16.msra.mxu0 0
    %172 = vmatprep.subr.bf16.mxu0 0
    %173 = vmatpush1.bf16.msra.mxu0 %v152
    %174 = vmatprep.subr.bf16.mxu0 0
    %175 = vmatpush2.bf16.msra.mxu0 0
    %176 = vmatprep.subr.bf16.mxu0 0
    %177 = vmatpush2.bf16.msra.mxu0 0
    %178 = vmatprep.subr.bf16.mxu0 0
    %179 = vmatpush2.bf16.msra.mxu0 0
    %180 = vmatprep.subr.bf16.mxu0 0
    %181 = vmatpush2.bf16.msra.mxu0 0
    %182 = vmatprep.subr.bf16.mxu0 0
    %183 = vmatpush2.bf16.msra.mxu0 0
    %184 = vmatprep.subr.bf16.mxu0 0
    %185 = vmatpush2.bf16.msra.mxu0 0
    %186 = vmatprep.subr.bf16.mxu0 0
    %187 = vmatpush2.bf16.msra.mxu0 0
    %188 = vmatprep.subr.bf16.mxu0 0
    %189 = vmatpush2.bf16.msra.mxu0 0
    %190 = vmatprep.mubr.bf16.mxu0 0
    %191 = vmatmul.mubr.bf16.gmra.mxu0 %v156
    %v192 = vpop.f32.mrf.mxu0
    %v193 = vadd.f32 %v146, %v192
    %v194 = vpop.f32.mrf.mxu0
    %v195 = vpop.f32.mrf.mxu0
    %v196 = vadd.f32 %v146, %v195
    %v197 = vpop.f32.mrf.mxu0
    %198 = vdwg.mxu0
    %v199 = vld [vmem:[%s4] sm:$0xff]
    %v200 = vld [vmem:[%s4 + $0x8] sm:$0xff]
    %v201 = vld [vmem:[%s4 + $0x10] sm:$0xff]
    %v202 = vpack.c.bf16 %v200, %v199
    %v203 = vpack.c.bf16 %v201, %v201
    %v204 = vld [vmem:[%s7] sm:$0xf]
    %vm205 = vcmask 64512
    %v207 = vsel %vm205, %v202, 0
    %v210 = vsel %vm205, %v203, 0
    %vm212 = vcmask 1043456
    %v214 = vsel %vm212, %v204, 0
    %216 = vmatprep.subr.bf16.mxu0 0
    %217 = vmatpush1.bf16.msra.mxu0 0
    %218 = vmatprep.subr.bf16.mxu0 0
    %219 = vmatpush1.bf16.msra.mxu0 0
    %220 = vmatprep.subr.bf16.mxu0 0
    %221 = vmatpush1.bf16.msra.mxu0 0
    %222 = vmatprep.subr.bf16.mxu0 0
    %223 = vmatpush1.bf16.msra.mxu0 0
    %224 = vmatprep.subr.bf16.mxu0 0
    %225 = vmatpush1.bf16.msra.mxu0 0
    %226 = vmatprep.subr.bf16.mxu0 0
    %227 = vmatpush1.bf16.msra.mxu0 0
    %228 = vmatprep.subr.bf16.mxu0 0
    %229 = vmatpush1.bf16.msra.mxu0 0
    %230 = vmatprep.subr.bf16.mxu0 0
    %231 = vmatpush1.bf16.msra.mxu0 %v214
    %232 = vmatprep.subr.bf16.mxu0 0
    %233 = vmatpush2.bf16.msra.mxu0 0
    %234 = vmatprep.subr.bf16.mxu0 0
    %235 = vmatpush2.bf16.msra.mxu0 0
    %236 = vmatprep.subr.bf16.mxu0 0
    %237 = vmatpush2.bf16.msra.mxu0 0
    %238 = vmatprep.subr.bf16.mxu0 0
    %239 = vmatpush2.bf16.msra.mxu0 0
    %240 = vmatprep.subr.bf16.mxu0 0
    %241 = vmatpush2.bf16.msra.mxu0 0
    %242 = vmatprep.subr.bf16.mxu0 0
    %243 = vmatpush2.bf16.msra.mxu0 0
    %244 = vmatprep.subr.bf16.mxu0 0
    %245 = vmatpush2.bf16.msra.mxu0 0
    %246 = vmatprep.subr.bf16.mxu0 0
    %247 = vmatpush2.bf16.msra.mxu0 0
    %248 = vmatprep.mubr.bf16.mxu0 0
    %249 = vmatmul.mubr.bf16.gmra.mxu0 %v207
    %v250 = vpop.f32.mrf.mxu0
    %v251 = vadd.f32 0.0, %v250
    %v252 = vpop.f32.mrf.mxu0
    %v253 = vpop.f32.mrf.mxu0
    %v254 = vadd.f32 0.0, %v253
    %v255 = vpop.f32.mrf.mxu0
    %256 = vmatprep.mubr.bf16.mxu0 0
    %257 = vmatmul.mubr.bf16.gmra.mxu0 %v210
    %v258 = vpop.f32.mrf.mxu0
    %v259 = vadd.f32 0.0, %v258
    %v260 = vpop.f32.mrf.mxu0
    %v261 = vpop.f32.mrf.mxu0
    %v262 = vpop.f32.mrf.mxu0
    %263 = vdwg.mxu0
    %vm264 = vcmask 97280
    %v266 = vsel %vm264, %v125, 0
    %v269 = vsel %vm264, %v126, 0
    %v272 = vsel %vm264, %v127, 0
    %v275 = vsel %vm212, %v196, 0
    %277 = vmatprep.subr.mxu0 0.0
    %278 = vmatpush1.msra.mxu0 0.0
    %279 = vmatprep.subr.mxu0 0.0
    %280 = vmatpush1.msra.mxu0 0.0
    %281 = vmatprep.subr.mxu0 0.0
    %282 = vmatpush1.msra.mxu0 0.0
    %283 = vmatprep.subr.mxu0 0.0
    %284 = vmatpush1.msra.mxu0 0.0
    %285 = vmatprep.subr.mxu0 0.0
    %286 = vmatpush1.msra.mxu0 0.0
    %287 = vmatprep.subr.mxu0 0.0
    %288 = vmatpush1.msra.mxu0 0.0
    %289 = vmatprep.subr.mxu0 0.0
    %290 = vmatpush1.msra.mxu0 0.0
    %291 = vmatprep.subr.mxu0 0.0
    %292 = vmatpush1.msra.mxu0 0.0
    %293 = vmatprep.subr.mxu0 0.0
    %294 = vmatpush1.msra.mxu0 0.0
    %295 = vmatprep.subr.mxu0 0.0
    %296 = vmatpush1.msra.mxu0 0.0
    %297 = vmatprep.subr.mxu0 0.0
    %298 = vmatpush1.msra.mxu0 0.0
    %299 = vmatprep.subr.mxu0 0.0
    %300 = vmatpush1.msra.mxu0 0.0
    %301 = vmatprep.subr.mxu0 0.0
    %302 = vmatpush1.msra.mxu0 0.0
    %303 = vmatprep.subr.mxu0 0.0
    %304 = vmatpush1.msra.mxu0 0.0
    %305 = vmatprep.subr.mxu0 0.0
    %306 = vmatpush1.msra.mxu0 %v275
    %307 = vmatprep.subr.mxu0 0.0
    %308 = vmatpush1.msra.mxu0 %v193
    %309 = vmatprep.subr.mxu0 0.0
    %310 = vmatpush2.msra.mxu0 0.0
    %311 = vmatprep.subr.mxu0 0.0
    %312 = vmatpush2.msra.mxu0 0.0
    %313 = vmatprep.subr.mxu0 0.0
    %314 = vmatpush2.msra.mxu0 0.0
    %315 = vmatprep.subr.mxu0 0.0
    %316 = vmatpush2.msra.mxu0 0.0
    %317 = vmatprep.subr.mxu0 0.0
    %318 = vmatpush2.msra.mxu0 0.0
    %319 = vmatprep.subr.mxu0 0.0
    %320 = vmatpush2.msra.mxu0 0.0
    %321 = vmatprep.subr.mxu0 0.0
    %322 = vmatpush2.msra.mxu0 0.0
    %323 = vmatprep.subr.mxu0 0.0
    %324 = vmatpush2.msra.mxu0 0.0
    %325 = vmatprep.subr.mxu0 0.0
    %326 = vmatpush2.msra.mxu0 0.0
    %327 = vmatprep.subr.mxu0 0.0
    %328 = vmatpush2.msra.mxu0 0.0
    %329 = vmatprep.subr.mxu0 0.0
    %330 = vmatpush2.msra.mxu0 0.0
    %331 = vmatprep.subr.mxu0 0.0
    %332 = vmatpush2.msra.mxu0 0.0
    %333 = vmatprep.subr.mxu0 0.0
    %334 = vmatpush2.msra.mxu0 0.0
    %335 = vmatprep.subr.mxu0 0.0
    %336 = vmatpush2.msra.mxu0 0.0
    %337 = vmatprep.subr.mxu0 0.0
    %338 = vmatpush2.msra.mxu0 0.0
    %339 = vmatprep.subr.mxu0 0.0
    %340 = vmatpush2.msra.mxu0 0.0
    %341 = vmatprep.mubr.f32.mxu0 0.0
    %342 = vmatmul.mubr.f32.gmra.mxu0 %v266
    %v343 = vpop.f32.mrf.mxu0
    %v344 = vadd.f32 0.0, %v343
    %v345 = vpop.f32.mrf.mxu0
    %346 = vmatprep.mubr.f32.mxu0 0.0
    %347 = vmatmul.mubr.f32.gmra.mxu0 %v269
    %v348 = vpop.f32.mrf.mxu0
    %v349 = vadd.f32 0.0, %v348
    %v350 = vpop.f32.mrf.mxu0
    %351 = vmatprep.mubr.f32.mxu0 0.0
    %352 = vmatmul.mubr.f32.gmra.mxu0 %v272
    %v353 = vpop.f32.mrf.mxu0
    %v354 = vadd.f32 0.0, %v353
    %v355 = vpop.f32.mrf.mxu0
    %356 = vdwg.mxu0
    %358 = vrot.lane.b32.xlu0 %v193, 96
    %v359 = vpop.permute.xlu0 %358
    %360 = vrot.lane.b32.xlu0 %v196, 96
    %v361 = vpop.permute.xlu0 %360
    %v364 = vsel %vm264, %v104, 0
    %v367 = vsel %vm264, %v105, 0
    %v370 = vsel %vm264, %v106, 0
    %v372 = vsel %vm212, %v361, 0
    %374 = vmatprep.subr.mxu0 0.0
    %375 = vmatpush1.msra.mxu0 0.0
    %376 = vmatprep.subr.mxu0 0.0
    %377 = vmatpush1.msra.mxu0 0.0
    %378 = vmatprep.subr.mxu0 0.0
    %379 = vmatpush1.msra.mxu0 0.0
    %380 = vmatprep.subr.mxu0 0.0
    %381 = vmatpush1.msra.mxu0 0.0
    %382 = vmatprep.subr.mxu0 0.0
    %383 = vmatpush1.msra.mxu0 0.0
    %384 = vmatprep.subr.mxu0 0.0
    %385 = vmatpush1.msra.mxu0 0.0
    %386 = vmatprep.subr.mxu0 0.0
    %387 = vmatpush1.msra.mxu0 0.0
    %388 = vmatprep.subr.mxu0 0.0
    %389 = vmatpush1.msra.mxu0 0.0
    %390 = vmatprep.subr.mxu0 0.0
    %391 = vmatpush1.msra.mxu0 0.0
    %392 = vmatprep.subr.mxu0 0.0
    %393 = vmatpush1.msra.mxu0 0.0
    %394 = vmatprep.subr.mxu0 0.0
    %395 = vmatpush1.msra.mxu0 0.0
    %396 = vmatprep.subr.mxu0 0.0
    %397 = vmatpush1.msra.mxu0 0.0
    %398 = vmatprep.subr.mxu0 0.0
    %399 = vmatpush1.msra.mxu0 0.0
    %400 = vmatprep.subr.mxu0 0.0
    %401 = vmatpush1.msra.mxu0 0.0
    %402 = vmatprep.subr.mxu0 0.0
    %403 = vmatpush1.msra.mxu0 %v372
    %404 = vmatprep.subr.mxu0 0.0
    %405 = vmatpush1.msra.mxu0 %v359
    %406 = vmatprep.subr.mxu0 0.0
    %407 = vmatpush2.msra.mxu0 0.0
    %408 = vmatprep.subr.mxu0 0.0
    %409 = vmatpush2.msra.mxu0 0.0
    %410 = vmatprep.subr.mxu0 0.0
    %411 = vmatpush2.msra.mxu0 0.0
    %412 = vmatprep.subr.mxu0 0.0
    %413 = vmatpush2.msra.mxu0 0.0
    %414 = vmatprep.subr.mxu0 0.0
    %415 = vmatpush2.msra.mxu0 0.0
    %416 = vmatprep.subr.mxu0 0.0
    %417 = vmatpush2.msra.mxu0 0.0
    %418 = vmatprep.subr.mxu0 0.0
    %419 = vmatpush2.msra.mxu0 0.0
    %420 = vmatprep.subr.mxu0 0.0
    %421 = vmatpush2.msra.mxu0 0.0
    %422 = vmatprep.subr.mxu0 0.0
    %423 = vmatpush2.msra.mxu0 0.0
    %424 = vmatprep.subr.mxu0 0.0
    %425 = vmatpush2.msra.mxu0 0.0
    %426 = vmatprep.subr.mxu0 0.0
    %427 = vmatpush2.msra.mxu0 0.0
    %428 = vmatprep.subr.mxu0 0.0
    %429 = vmatpush2.msra.mxu0 0.0
    %430 = vmatprep.subr.mxu0 0.0
    %431 = vmatpush2.msra.mxu0 0.0
    %432 = vmatprep.subr.mxu0 0.0
    %433 = vmatpush2.msra.mxu0 0.0
    %434 = vmatprep.subr.mxu0 0.0
    %435 = vmatpush2.msra.mxu0 0.0
    %436 = vmatprep.subr.mxu0 0.0
    %437 = vmatpush2.msra.mxu0 0.0
    %438 = vmatprep.mubr.f32.mxu0 0.0
    %439 = vmatmul.mubr.f32.gmra.mxu0 %v364
    %v440 = vpop.f32.mrf.mxu0
    %v441 = vadd.f32 %v251, %v440
    %v442 = vpop.f32.mrf.mxu0
    %443 = vmatprep.mubr.f32.mxu0 0.0
    %444 = vmatmul.mubr.f32.gmra.mxu0 %v367
    %v445 = vpop.f32.mrf.mxu0
    %v446 = vadd.f32 %v254, %v445
    %v447 = vpop.f32.mrf.mxu0
    %448 = vmatprep.mubr.f32.mxu0 0.0
    %449 = vmatmul.mubr.f32.gmra.mxu0 %v370
    %v450 = vpop.f32.mrf.mxu0
    %v451 = vadd.f32 %v259, %v450
    %v452 = vpop.f32.mrf.mxu0
    %453 = vdwg.mxu0
    %454 = vrot.lane.b32.xlu0 %v193, 64
    %v455 = vpop.permute.xlu0 %454
    %456 = vrot.lane.b32.xlu0 %v196, 64
    %v457 = vpop.permute.xlu0 %456
    %v459 = vsel %vm212, %v457, 0
    %461 = vmatprep.subr.mxu0 0.0
    %462 = vmatpush1.msra.mxu0 0.0
    %463 = vmatprep.subr.mxu0 0.0
    %464 = vmatpush1.msra.mxu0 0.0
    %465 = vmatprep.subr.mxu0 0.0
    %466 = vmatpush1.msra.mxu0 0.0
    %467 = vmatprep.subr.mxu0 0.0
    %468 = vmatpush1.msra.mxu0 0.0
    %469 = vmatprep.subr.mxu0 0.0
    %470 = vmatpush1.msra.mxu0 0.0
    %471 = vmatprep.subr.mxu0 0.0
    %472 = vmatpush1.msra.mxu0 0.0
    %473 = vmatprep.subr.mxu0 0.0
    %474 = vmatpush1.msra.mxu0 0.0
    %475 = vmatprep.subr.mxu0 0.0
    %476 = vmatpush1.msra.mxu0 0.0
    %477 = vmatprep.subr.mxu0 0.0
    %478 = vmatpush1.msra.mxu0 0.0
    %479 = vmatprep.subr.mxu0 0.0
    %480 = vmatpush1.msra.mxu0 0.0
    %481 = vmatprep.subr.mxu0 0.0
    %482 = vmatpush1.msra.mxu0 0.0
    %483 = vmatprep.subr.mxu0 0.0
    %484 = vmatpush1.msra.mxu0 0.0
    %485 = vmatprep.subr.mxu0 0.0
    %486 = vmatpush1.msra.mxu0 0.0
    %487 = vmatprep.subr.mxu0 0.0
    %488 = vmatpush1.msra.mxu0 0.0
    %489 = vmatprep.subr.mxu0 0.0
    %490 = vmatpush1.msra.mxu0 %v459
    %491 = vmatprep.subr.mxu0 0.0
    %492 = vmatpush1.msra.mxu0 %v455
    %493 = vmatprep.subr.mxu0 0.0
    %494 = vmatpush2.msra.mxu0 0.0
    %495 = vmatprep.subr.mxu0 0.0
    %496 = vmatpush2.msra.mxu0 0.0
    %497 = vmatprep.subr.mxu0 0.0
    %498 = vmatpush2.msra.mxu0 0.0
    %499 = vmatprep.subr.mxu0 0.0
    %500 = vmatpush2.msra.mxu0 0.0
    %501 = vmatprep.subr.mxu0 0.0
    %502 = vmatpush2.msra.mxu0 0.0
    %503 = vmatprep.subr.mxu0 0.0
    %504 = vmatpush2.msra.mxu0 0.0
    %505 = vmatprep.subr.mxu0 0.0
    %506 = vmatpush2.msra.mxu0 0.0
    %507 = vmatprep.subr.mxu0 0.0
    %508 = vmatpush2.msra.mxu0 0.0
    %509 = vmatprep.subr.mxu0 0.0
    %510 = vmatpush2.msra.mxu0 0.0
    %511 = vmatprep.subr.mxu0 0.0
    %512 = vmatpush2.msra.mxu0 0.0
    %513 = vmatprep.subr.mxu0 0.0
    %514 = vmatpush2.msra.mxu0 0.0
    %515 = vmatprep.subr.mxu0 0.0
    %516 = vmatpush2.msra.mxu0 0.0
    %517 = vmatprep.subr.mxu0 0.0
    %518 = vmatpush2.msra.mxu0 0.0
    %519 = vmatprep.subr.mxu0 0.0
    %520 = vmatpush2.msra.mxu0 0.0
    %521 = vmatprep.subr.mxu0 0.0
    %522 = vmatpush2.msra.mxu0 0.0
    %523 = vmatprep.subr.mxu0 0.0
    %524 = vmatpush2.msra.mxu0 0.0
    %525 = vmatprep.mubr.f32.mxu0 0.0
    %526 = vmatmul.mubr.f32.gmra.mxu0 %v364
    %v527 = vpop.f32.mrf.mxu0
    %v528 = vadd.f32 %v251, %v527
    %v529 = vpop.f32.mrf.mxu0
    %530 = vmatprep.mubr.f32.mxu0 0.0
    %531 = vmatmul.mubr.f32.gmra.mxu0 %v367
    %v532 = vpop.f32.mrf.mxu0
    %v533 = vadd.f32 %v254, %v532
    %v534 = vpop.f32.mrf.mxu0
    %535 = vmatprep.mubr.f32.mxu0 0.0
    %536 = vmatmul.mubr.f32.gmra.mxu0 %v370
    %v537 = vpop.f32.mrf.mxu0
    %v538 = vadd.f32 %v259, %v537
    %v539 = vpop.f32.mrf.mxu0
    %540 = vdwg.mxu0
    %v541 = vmul.f32 %v344, %v441
    %v542 = vmul.f32 %v349, %v446
    %v543 = vmul.f32 %v354, %v451
    %v544 = vld [vmem:[%s8] sm:$0xf]
    %v545 = vsel %vm205, %v541, 0.0
    %546 = vadd.xlane.f32.xlu0 %v545
    %v547 = vpop.xlane.xlu0 %546
    %v548 = vsel %vm205, %v542, 0.0
    %549 = vadd.xlane.f32.xlu0 %v548
    %v550 = vpop.xlane.xlu0 %549
    %v551 = vsel %vm205, %v543, 0.0
    %552 = vadd.xlane.f32.xlu0 %v551
    %v553 = vpop.xlane.xlu0 %552
    %v554 = vsel %vm119, %v547, -1e+30
    %v555 = vsel %vm120, %v550, -1e+30
    %v556 = vsel %vm121, %v553, -1e+30
    %v557 = vsel %vm264, %v554, -inf
    %v558 = vsel %vm264, %v555, -inf
    %v559 = vsel %vm264, %v556, -inf
    %v560 = vmax.f32 %v557, %v558
    %v561 = vmax.f32 %v560, %v559
    %v562 = vrot.slane %v561, 4
    %v563 = vmax.f32 %v561, %v562
    %v564 = vrot.slane %v563, 2
    %v565 = vmax.f32 %v563, %v564
    %v566 = vrot.slane %v565, 1
    %v567 = vmax.f32 %v565, %v566
    %v568 = vmul.f32 %v125, %v567
    %v569 = vmul.f32 %v126, %v567
    %v570 = vmul.f32 %v127, %v567
    %v571 = vsel %vm264, %v568, 0.0
    %572 = vadd.xlane.f32.xlu0 %v571
    %v573 = vpop.xlane.xlu0 %572
    %v574 = vsel %vm264, %v569, 0.0
    %575 = vadd.xlane.f32.xlu0 %v574
    %v576 = vpop.xlane.xlu0 %575
    %v577 = vsel %vm264, %v570, 0.0
    %578 = vadd.xlane.f32.xlu0 %v577
    %v579 = vpop.xlane.xlu0 %578
    %v580 = vsub.f32 %v547, %v573
    %v581 = vsub.f32 %v550, %v576
    %v582 = vsub.f32 %v553, %v579
    %v583 = vmul.f32 %v580, 1.442695
    %v584 = vpow.pop %v583
    %v585 = vmul.f32 %v581, 1.442695
    %v586 = vpow.pop %v585
    %v587 = vmul.f32 %v582, 1.442695
    %v588 = vpow.pop %v587
    %v589 = vlaneseq
    %v590 = vshrl.u32 %v589, 7
    %v591 = vsub.s32 0, %v590
    %v592 = vrot.slane %v544, %v591
    %v593 = vmul.f32 %v584, %v592
    %v594 = vmul.f32 %v586, %v592
    %v595 = vmul.f32 %v588, %v592
    %v596 = vadd.f32 %v593, 0.0
    %v597 = vadd.f32 %v594, 0.0
    %v598 = vadd.f32 %v595, 0.0
    %602 = vrot.lane.b32.xlu0 %v541, 120
    %v603 = vpop.permute.xlu0 %602
    %604 = vrot.lane.b32.xlu0 %v542, 120
    %v605 = vpop.permute.xlu0 %604
    %606 = vrot.lane.b32.xlu0 %v543, 120
    %v607 = vpop.permute.xlu0 %606
    %v611 = vsel %vm205, %v603, 0.0
    %612 = vadd.xlane.f32.xlu0 %v611
    %v613 = vpop.xlane.xlu0 %612
    %v614 = vsel %vm205, %v605, 0.0
    %615 = vadd.xlane.f32.xlu0 %v614
    %v616 = vpop.xlane.xlu0 %615
    %v617 = vsel %vm205, %v607, 0.0
    %618 = vadd.xlane.f32.xlu0 %v617
    %v619 = vpop.xlane.xlu0 %618
    %v620 = vsel %vm119, %v613, -1e+30
    %v621 = vsel %vm120, %v616, -1e+30
    %v622 = vsel %vm121, %v619, -1e+30
    %v623 = vsel %vm264, %v620, -inf
    %v624 = vsel %vm264, %v621, -inf
    %v625 = vsel %vm264, %v622, -inf
    %v626 = vmax.f32 %v623, %v624
    %v627 = vmax.f32 %v626, %v625
    %v628 = vrot.slane %v627, 4
    %v629 = vmax.f32 %v627, %v628
    %v630 = vrot.slane %v629, 2
    %v631 = vmax.f32 %v629, %v630
    %v632 = vrot.slane %v631, 1
    %v633 = vmax.f32 %v631, %v632
    %v634 = vmul.f32 %v125, %v633
    %v635 = vmul.f32 %v126, %v633
    %v636 = vmul.f32 %v127, %v633
    %v637 = vsel %vm264, %v634, 0.0
    %638 = vadd.xlane.f32.xlu0 %v637
    %v639 = vpop.xlane.xlu0 %638
    %v640 = vsel %vm264, %v635, 0.0
    %641 = vadd.xlane.f32.xlu0 %v640
    %v642 = vpop.xlane.xlu0 %641
    %v643 = vsel %vm264, %v636, 0.0
    %644 = vadd.xlane.f32.xlu0 %v643
    %v645 = vpop.xlane.xlu0 %644
    %v646 = vsub.f32 %v613, %v639
    %v647 = vsub.f32 %v616, %v642
    %v648 = vsub.f32 %v619, %v645
    %v649 = vmul.f32 %v646, 1.442695
    %v650 = vpow.pop %v649
    %v651 = vmul.f32 %v647, 1.442695
    %v652 = vpow.pop %v651
    %v653 = vmul.f32 %v648, 1.442695
    %v654 = vpow.pop %v653
    %v655 = vlaneseq
    %v656 = vshrl.u32 %v655, 7
    %v657 = vsub.s32 1, %v656
    %v658 = vrot.slane %v544, %v657
    %v659 = vmul.f32 %v650, %v658
    %v660 = vmul.f32 %v652, %v658
    %v661 = vmul.f32 %v654, %v658
    %v662 = vadd.f32 %v596, %v659
    %v663 = vadd.f32 %v597, %v660
    %v664 = vadd.f32 %v598, %v661
    %665 = vrot.lane.b32.xlu0 %v541, 112
    %v666 = vpop.permute.xlu0 %665
    %667 = vrot.lane.b32.xlu0 %v542, 112
    %v668 = vpop.permute.xlu0 %667
    %669 = vrot.lane.b32.xlu0 %v543, 112
    %v670 = vpop.permute.xlu0 %669
    %v674 = vsel %vm205, %v666, 0.0
    %675 = vadd.xlane.f32.xlu0 %v674
    %v676 = vpop.xlane.xlu0 %675
    %v677 = vsel %vm205, %v668, 0.0
    %678 = vadd.xlane.f32.xlu0 %v677
    %v679 = vpop.xlane.xlu0 %678
    %v680 = vsel %vm205, %v670, 0.0
    %681 = vadd.xlane.f32.xlu0 %v680
    %v682 = vpop.xlane.xlu0 %681
    %v683 = vsel %vm119, %v676, -1e+30
    %v684 = vsel %vm120, %v679, -1e+30
    %v685 = vsel %vm121, %v682, -1e+30
    %v686 = vsel %vm264, %v683, -inf
    %v687 = vsel %vm264, %v684, -inf
    %v688 = vsel %vm264, %v685, -inf
    %v689 = vmax.f32 %v686, %v687
    %v690 = vmax.f32 %v689, %v688
    %v691 = vrot.slane %v690, 4
    %v692 = vmax.f32 %v690, %v691
    %v693 = vrot.slane %v692, 2
    %v694 = vmax.f32 %v692, %v693
    %v695 = vrot.slane %v694, 1
    %v696 = vmax.f32 %v694, %v695
    %v697 = vmul.f32 %v125, %v696
    %v698 = vmul.f32 %v126, %v696
    %v699 = vmul.f32 %v127, %v696
    %v700 = vsel %vm264, %v697, 0.0
    %701 = vadd.xlane.f32.xlu0 %v700
    %v702 = vpop.xlane.xlu0 %701
    %v703 = vsel %vm264, %v698, 0.0
    %704 = vadd.xlane.f32.xlu0 %v703
    %v705 = vpop.xlane.xlu0 %704
    %v706 = vsel %vm264, %v699, 0.0
    %707 = vadd.xlane.f32.xlu0 %v706
    %v708 = vpop.xlane.xlu0 %707
    %v709 = vsub.f32 %v676, %v702
    %v710 = vsub.f32 %v679, %v705
    %v711 = vsub.f32 %v682, %v708
    %v712 = vmul.f32 %v709, 1.442695
    %v713 = vpow.pop %v712
    %v714 = vmul.f32 %v710, 1.442695
    %v715 = vpow.pop %v714
    %v716 = vmul.f32 %v711, 1.442695
    %v717 = vpow.pop %v716
    %v718 = vlaneseq
    %v719 = vshrl.u32 %v718, 7
    %v720 = vsub.s32 2, %v719
    %v721 = vrot.slane %v544, %v720
    %v722 = vmul.f32 %v713, %v721
    %v723 = vmul.f32 %v715, %v721
    %v724 = vmul.f32 %v717, %v721
    %v725 = vadd.f32 %v662, %v722
    %v726 = vadd.f32 %v663, %v723
    %v727 = vadd.f32 %v664, %v724
    %728 = vrot.lane.b32.xlu0 %v541, 104
    %v729 = vpop.permute.xlu0 %728
    %730 = vrot.lane.b32.xlu0 %v542, 104
    %v731 = vpop.permute.xlu0 %730
    %732 = vrot.lane.b32.xlu0 %v543, 104
    %v733 = vpop.permute.xlu0 %732
    %v737 = vsel %vm205, %v729, 0.0
    %738 = vadd.xlane.f32.xlu0 %v737
    %v739 = vpop.xlane.xlu0 %738
    %v740 = vsel %vm205, %v731, 0.0
    %741 = vadd.xlane.f32.xlu0 %v740
    %v742 = vpop.xlane.xlu0 %741
    %v743 = vsel %vm205, %v733, 0.0
    %744 = vadd.xlane.f32.xlu0 %v743
    %v745 = vpop.xlane.xlu0 %744
    %v746 = vsel %vm119, %v739, -1e+30
    %v747 = vsel %vm120, %v742, -1e+30
    %v748 = vsel %vm121, %v745, -1e+30
    %v749 = vsel %vm264, %v746, -inf
    %v750 = vsel %vm264, %v747, -inf
    %v751 = vsel %vm264, %v748, -inf
    %v752 = vmax.f32 %v749, %v750
    %v753 = vmax.f32 %v752, %v751
    %v754 = vrot.slane %v753, 4
    %v755 = vmax.f32 %v753, %v754
    %v756 = vrot.slane %v755, 2
    %v757 = vmax.f32 %v755, %v756
    %v758 = vrot.slane %v757, 1
    %v759 = vmax.f32 %v757, %v758
    %v760 = vmul.f32 %v125, %v759
    %v761 = vmul.f32 %v126, %v759
    %v762 = vmul.f32 %v127, %v759
    %v763 = vsel %vm264, %v760, 0.0
    %764 = vadd.xlane.f32.xlu0 %v763
    %v765 = vpop.xlane.xlu0 %764
    %v766 = vsel %vm264, %v761, 0.0
    %767 = vadd.xlane.f32.xlu0 %v766
    %v768 = vpop.xlane.xlu0 %767
    %v769 = vsel %vm264, %v762, 0.0
    %770 = vadd.xlane.f32.xlu0 %v769
    %v771 = vpop.xlane.xlu0 %770
    %v772 = vsub.f32 %v739, %v765
    %v773 = vsub.f32 %v742, %v768
    %v774 = vsub.f32 %v745, %v771
    %v775 = vmul.f32 %v772, 1.442695
    %v776 = vpow.pop %v775
    %v777 = vmul.f32 %v773, 1.442695
    %v778 = vpow.pop %v777
    %v779 = vmul.f32 %v774, 1.442695
    %v780 = vpow.pop %v779
    %v781 = vlaneseq
    %v782 = vshrl.u32 %v781, 7
    %v783 = vsub.s32 3, %v782
    %v784 = vrot.slane %v544, %v783
    %v785 = vmul.f32 %v776, %v784
    %v786 = vmul.f32 %v778, %v784
    %v787 = vmul.f32 %v780, %v784
    %v788 = vadd.f32 %v725, %v785
    %v789 = vadd.f32 %v726, %v786
    %v790 = vadd.f32 %v727, %v787
    %v791 = vmul.f32 %v788, %v528
    %v792 = vmul.f32 %v789, %v533
    %v793 = vmul.f32 %v790, %v538
    %vm795 = vcmask 195584
    %v796 = vsel %vm795, %v135, 0
    %798 = vmatprep.subr.mxu0 0.0
    %799 = vmatpush1.msra.mxu0 0.0
    %800 = vmatprep.subr.mxu0 0.0
    %801 = vmatpush1.msra.mxu0 0.0
    %802 = vmatprep.subr.mxu0 0.0
    %803 = vmatpush1.msra.mxu0 0.0
    %804 = vmatprep.subr.mxu0 0.0
    %805 = vmatpush1.msra.mxu0 0.0
    %806 = vmatprep.subr.mxu0 0.0
    %807 = vmatpush1.msra.mxu0 0.0
    %808 = vmatprep.subr.mxu0 0.0
    %809 = vmatpush1.msra.mxu0 0.0
    %810 = vmatprep.subr.mxu0 0.0
    %811 = vmatpush1.msra.mxu0 0.0
    %812 = vmatprep.subr.mxu0 0.0
    %813 = vmatpush1.msra.mxu0 0.0
    %814 = vmatprep.subr.mxu0 0.0
    %815 = vmatpush1.msra.mxu0 0.0
    %816 = vmatprep.subr.mxu0 0.0
    %817 = vmatpush1.msra.mxu0 0.0
    %818 = vmatprep.subr.mxu0 0.0
    %819 = vmatpush1.msra.mxu0 0.0
    %820 = vmatprep.subr.mxu0 0.0
    %821 = vmatpush1.msra.mxu0 0.0
    %822 = vmatprep.subr.mxu0 0.0
    %823 = vmatpush1.msra.mxu0 0.0
    %824 = vmatprep.subr.mxu0 0.0
    %825 = vmatpush1.msra.mxu0 %v793
    %826 = vmatprep.subr.mxu0 0.0
    %827 = vmatpush1.msra.mxu0 %v792
    %828 = vmatprep.subr.mxu0 0.0
    %829 = vmatpush1.msra.mxu0 %v791
    %830 = vmatprep.subr.mxu0 0.0
    %831 = vmatpush2.msra.mxu0 0.0
    %832 = vmatprep.subr.mxu0 0.0
    %833 = vmatpush2.msra.mxu0 0.0
    %834 = vmatprep.subr.mxu0 0.0
    %835 = vmatpush2.msra.mxu0 0.0
    %836 = vmatprep.subr.mxu0 0.0
    %837 = vmatpush2.msra.mxu0 0.0
    %838 = vmatprep.subr.mxu0 0.0
    %839 = vmatpush2.msra.mxu0 0.0
    %840 = vmatprep.subr.mxu0 0.0
    %841 = vmatpush2.msra.mxu0 0.0
    %842 = vmatprep.subr.mxu0 0.0
    %843 = vmatpush2.msra.mxu0 0.0
    %844 = vmatprep.subr.mxu0 0.0
    %845 = vmatpush2.msra.mxu0 0.0
    %846 = vmatprep.subr.mxu0 0.0
    %847 = vmatpush2.msra.mxu0 0.0
    %848 = vmatprep.subr.mxu0 0.0
    %849 = vmatpush2.msra.mxu0 0.0
    %850 = vmatprep.subr.mxu0 0.0
    %851 = vmatpush2.msra.mxu0 0.0
    %852 = vmatprep.subr.mxu0 0.0
    %853 = vmatpush2.msra.mxu0 0.0
    %854 = vmatprep.subr.mxu0 0.0
    %855 = vmatpush2.msra.mxu0 0.0
    %856 = vmatprep.subr.mxu0 0.0
    %857 = vmatpush2.msra.mxu0 0.0
    %858 = vmatprep.subr.mxu0 0.0
    %859 = vmatpush2.msra.mxu0 0.0
    %860 = vmatprep.subr.mxu0 0.0
    %861 = vmatpush2.msra.mxu0 0.0
    %862 = vmatprep.mubr.f32.mxu0 0.0
    %863 = vmatmul.mubr.f32.gmra.mxu0 %v796
    %v864 = vpop.f32.mrf.mxu0
    %v865 = vadd.f32 0.0, %v864
    %v866 = vpop.f32.mrf.mxu0
    %867 = vmatprep.mubr.f32.mxu0 0.0
    %868 = vmatmul.mubr.f32.gmra.mxu0 %v796
    %v869 = vpop.f32.mrf.mxu0
    %v870 = vadd.f32 0.0, %v869
    %v871 = vpop.f32.mrf.mxu0
    %872 = vdwg.mxu0
    %873 = vmatprep.subr.mxu0 0.0
    %874 = vmatpush1.msra.mxu0 0.0
    %875 = vmatprep.subr.mxu0 0.0
    %876 = vmatpush1.msra.mxu0 0.0
    %877 = vmatprep.subr.mxu0 0.0
    %878 = vmatpush1.msra.mxu0 0.0
    %879 = vmatprep.subr.mxu0 0.0
    %880 = vmatpush1.msra.mxu0 0.0
    %881 = vmatprep.subr.mxu0 0.0
    %882 = vmatpush1.msra.mxu0 0.0
    %883 = vmatprep.subr.mxu0 0.0
    %884 = vmatpush1.msra.mxu0 0.0
    %885 = vmatprep.subr.mxu0 0.0
    %886 = vmatpush1.msra.mxu0 0.0
    %887 = vmatprep.subr.mxu0 0.0
    %888 = vmatpush1.msra.mxu0 0.0
    %889 = vmatprep.subr.mxu0 0.0
    %890 = vmatpush1.msra.mxu0 0.0
    %891 = vmatprep.subr.mxu0 0.0
    %892 = vmatpush1.msra.mxu0 0.0
    %893 = vmatprep.subr.mxu0 0.0
    %894 = vmatpush1.msra.mxu0 0.0
    %895 = vmatprep.subr.mxu0 0.0
    %896 = vmatpush1.msra.mxu0 0.0
    %897 = vmatprep.subr.mxu0 0.0
    %898 = vmatpush1.msra.mxu0 0.0
    %899 = vmatprep.subr.mxu0 0.0
    %900 = vmatpush1.msra.mxu0 %v790
    %901 = vmatprep.subr.mxu0 0.0
    %902 = vmatpush1.msra.mxu0 %v789
    %903 = vmatprep.subr.mxu0 0.0
    %904 = vmatpush1.msra.mxu0 %v788
    %905 = vmatprep.subr.mxu0 0.0
    %906 = vmatpush2.msra.mxu0 0.0
    %907 = vmatprep.subr.mxu0 0.0
    %908 = vmatpush2.msra.mxu0 0.0
    %909 = vmatprep.subr.mxu0 0.0
    %910 = vmatpush2.msra.mxu0 0.0
    %911 = vmatprep.subr.mxu0 0.0
    %912 = vmatpush2.msra.mxu0 0.0
    %913 = vmatprep.subr.mxu0 0.0
    %914 = vmatpush2.msra.mxu0 0.0
    %915 = vmatprep.subr.mxu0 0.0
    %916 = vmatpush2.msra.mxu0 0.0
    %917 = vmatprep.subr.mxu0 0.0
    %918 = vmatpush2.msra.mxu0 0.0
    %919 = vmatprep.subr.mxu0 0.0
    %920 = vmatpush2.msra.mxu0 0.0
    %921 = vmatprep.subr.mxu0 0.0
    %922 = vmatpush2.msra.mxu0 0.0
    %923 = vmatprep.subr.mxu0 0.0
    %924 = vmatpush2.msra.mxu0 0.0
    %925 = vmatprep.subr.mxu0 0.0
    %926 = vmatpush2.msra.mxu0 0.0
    %927 = vmatprep.subr.mxu0 0.0
    %928 = vmatpush2.msra.mxu0 0.0
    %929 = vmatprep.subr.mxu0 0.0
    %930 = vmatpush2.msra.mxu0 0.0
    %931 = vmatprep.subr.mxu0 0.0
    %932 = vmatpush2.msra.mxu0 0.0
    %933 = vmatprep.subr.mxu0 0.0
    %934 = vmatpush2.msra.mxu0 0.0
    %935 = vmatprep.subr.mxu0 0.0
    %936 = vmatpush2.msra.mxu0 0.0
    %937 = vmatprep.mubr.f32.mxu0 0.0
    %938 = vmatmul.mubr.f32.gmra.mxu0 %v796
    %v939 = vpop.f32.mrf.mxu0
    %v940 = vadd.f32 0.0, %v939
    %v941 = vpop.f32.mrf.mxu0
    %942 = vmatprep.mubr.f32.mxu0 0.0
    %943 = vmatmul.mubr.f32.gmra.mxu0 %v796
    %v944 = vpop.f32.mrf.mxu0
    %v945 = vadd.f32 0.0, %v944
    %v946 = vpop.f32.mrf.mxu0
    %947 = vdwg.mxu0
    %vm948 = vcmp.eq.f32.partialorder %v940, 0.0
    %vm949 = vcmp.eq.f32.partialorder %v945, 0.0
    %v950 = vsel %vm948, 1.0, %v940
    %v951 = vsel %vm949, 1.0, %v945
    %v952 = vrcp.pop %v950
    %v953 = vmul.f32 %v865, %v952
    %v954 = vrcp.pop %v951
    %v955 = vmul.f32 %v870, %v954
    %956 = vrot.lane.b32.xlu0 %v193, 32
    %v957 = vpop.permute.xlu0 %956
    %958 = vrot.lane.b32.xlu0 %v196, 32
    %v959 = vpop.permute.xlu0 %958
    %v962 = vadd.f32 %v953, %v957
    %v963 = vadd.f32 %v955, %v959
    %v964 = vld [vmem:[%s9] sm:$0x1]
    %v965 = vld [vmem:[%s10] sm:$0x1]
    %vm966 = vcmask 261120
    %v967 = vsel %vm966, %v962, 0.0
    %vm968 = vcmask 257024
    %v969 = vsel %vm968, %v963, 0.0
    %v970 = vadd.f32 %v967, %v969
    %v971 = vrot.slane %v970, 4
    %v972 = vadd.f32 %v970, %v971
    %v973 = vrot.slane %v972, 2
    %v974 = vadd.f32 %v972, %v973
    %v975 = vrot.slane %v974, 1
    %v976 = vadd.f32 %v974, %v975
    %v977 = vrcp.pop 12.0
    %v978 = vmul.f32 %v976, %v977
    %v979 = vsub.f32 %v962, %v978
    %v980 = vsub.f32 %v963, %v978
    %v981 = vmul.f32 %v979, %v979
    %v982 = vmul.f32 %v980, %v980
    %v983 = vsel %vm966, %v981, 0.0
    %v984 = vsel %vm968, %v982, 0.0
    %v985 = vadd.f32 %v983, %v984
    %v986 = vrot.slane %v985, 4
    %v987 = vadd.f32 %v985, %v986
    %v988 = vrot.slane %v987, 2
    %v989 = vadd.f32 %v987, %v988
    %v990 = vrot.slane %v989, 1
    %v991 = vadd.f32 %v989, %v990
    %v992 = vmul.f32 %v991, %v977
    %v993 = vadd.f32 %v992, 1e-05
    %v994 = vrsqrt.pop %v993
    %v995 = vmul.f32 %v979, %v994
    %v996 = vmul.f32 %v980, %v994
    %v998 = vlaneseq
    %v999 = vshrl.u32 %v998, 7
    %v1000 = vsub.s32 0, %v999
    %v1001 = vrot.slane %v964, %v1000
    %v1003 = vmul.f32 %v995, %v1001
    %v1004 = vmul.f32 %v996, %v1001
    %v1006 = vlaneseq
    %v1007 = vshrl.u32 %v1006, 7
    %v1008 = vsub.s32 0, %v1007
    %v1009 = vrot.slane %v965, %v1008
    %v1011 = vadd.f32 %v1003, %v1009
    %v1012 = vadd.f32 %v1004, %v1009
    %v1013 = vpack.c.bf16 %v1012, %v1011
    %v1014 = vld [vmem:[%s13] sm:$0xf]
    %v1015 = vld [vmem:[%s13 + $0x4] sm:$0xf]
    %v1016 = vld [vmem:[%s13 + $0x8] sm:$0xf]
    %v1017 = vld [vmem:[%s13 + $0xc] sm:$0xf]
    %v1018 = vld [vmem:[%s14] sm:$0x1]
    %v1020 = vlaneseq
    %v1021 = vshrl.u32 %v1020, 7
    %v1022 = vsub.s32 0, %v1021
    %v1023 = vrot.slane %v1018, %v1022
    %v1029 = vunpack.c.l.b16 %v1014
    %v1030 = vunpack.c.l.b16 %v1015
    %v1031 = vunpack.c.l.b16 %v1016
    %v1032 = vunpack.c.l.b16 %v1017
    %v1033 = vpack.c.b16 %v1030, %v1029
    %v1034 = vpack.c.b16 %v1032, %v1031
    %v1038 = vsel %vm966, %v1013, 0
    %1040 = vmatprep.subr.bf16.mxu0 0
    %1041 = vmatpush1.bf16.msra.mxu0 0
    %1042 = vmatprep.subr.bf16.mxu0 0
    %1043 = vmatpush1.bf16.msra.mxu0 0
    %1044 = vmatprep.subr.bf16.mxu0 0
    %1045 = vmatpush1.bf16.msra.mxu0 0
    %1046 = vmatprep.subr.bf16.mxu0 0
    %1047 = vmatpush1.bf16.msra.mxu0 0
    %1048 = vmatprep.subr.bf16.mxu0 0
    %1049 = vmatpush1.bf16.msra.mxu0 0
    %1050 = vmatprep.subr.bf16.mxu0 0
    %1051 = vmatpush1.bf16.msra.mxu0 0
    %1052 = vmatprep.subr.bf16.mxu0 0
    %1053 = vmatpush1.bf16.msra.mxu0 %v1034
    %1054 = vmatprep.subr.bf16.mxu0 0
    %1055 = vmatpush1.bf16.msra.mxu0 %v1033
    %1056 = vmatprep.subr.bf16.mxu0 0
    %1057 = vmatpush2.bf16.msra.mxu0 0
    %1058 = vmatprep.subr.bf16.mxu0 0
    %1059 = vmatpush2.bf16.msra.mxu0 0
    %1060 = vmatprep.subr.bf16.mxu0 0
    %1061 = vmatpush2.bf16.msra.mxu0 0
    %1062 = vmatprep.subr.bf16.mxu0 0
    %1063 = vmatpush2.bf16.msra.mxu0 0
    %1064 = vmatprep.subr.bf16.mxu0 0
    %1065 = vmatpush2.bf16.msra.mxu0 0
    %1066 = vmatprep.subr.bf16.mxu0 0
    %1067 = vmatpush2.bf16.msra.mxu0 0
    %1068 = vmatprep.subr.bf16.mxu0 0
    %1069 = vmatpush2.bf16.msra.mxu0 0
    %1070 = vmatprep.subr.bf16.mxu0 0
    %1071 = vmatpush2.bf16.msra.mxu0 0
    %1072 = vmatprep.mubr.bf16.mxu0 0
    %1073 = vmatmul.mubr.bf16.gmra.mxu0 %v1038
    %v1074 = vpop.f32.mrf.mxu0
    %v1075 = vadd.f32 %v1023, %v1074
    %v1076 = vpop.f32.mrf.mxu0
    %v1077 = vpop.f32.mrf.mxu0
    %v1078 = vadd.f32 %v1023, %v1077
    %v1079 = vpop.f32.mrf.mxu0
    %1080 = vdwg.mxu0
    %v1081 = vmul.f32 %v1075, 0.5
    %v1082 = vmul.f32 %v1078, 0.5
    %v1083 = vmul.f32 %v1075, 0.70710677
    %v1084 = vmul.f32 %v1078, 0.70710677
    %v1085 = verf.f32.pop %v1083
    %v1086 = verf.f32.pop %v1084
    %v1087 = vadd.f32 %v1085, 1.0
    %v1088 = vadd.f32 %v1086, 1.0
    %v1089 = vmul.f32 %v1081, %v1087
    %v1090 = vmul.f32 %v1082, %v1088
    %v1091 = vpack.c.bf16 %v1090, %v1089
    %v1092 = vld [vmem:[%s15] sm:$0xf]
    %v1093 = vld [vmem:[%s15 + $0x4] sm:$0xf]
    %v1094 = vld [vmem:[%s15 + $0x8] sm:$0xf]
    %v1095 = vld [vmem:[%s15 + $0xc] sm:$0xf]
    %v1096 = vld [vmem:[%s15 + $0x10] sm:$0xf]
    %v1097 = vld [vmem:[%s15 + $0x14] sm:$0xf]
    %v1098 = vld [vmem:[%s15 + $0x18] sm:$0xf]
    %v1099 = vld [vmem:[%s15 + $0x1c] sm:$0xf]
    %v1100 = vld [vmem:[%s16] sm:$0x1]
    %v1102 = vlaneseq
    %v1103 = vshrl.u32 %v1102, 7
    %v1104 = vsub.s32 0, %v1103
    %v1105 = vrot.slane %v1100, %v1104
    %v1115 = vunpack.c.l.b16 %v1092
    %v1116 = vunpack.c.l.b16 %v1093
    %v1117 = vunpack.c.l.b16 %v1094
    %v1118 = vunpack.c.l.b16 %v1095
    %v1119 = vunpack.c.l.b16 %v1096
    %v1120 = vunpack.c.l.b16 %v1097
    %v1121 = vunpack.c.l.b16 %v1098
    %v1122 = vunpack.c.l.b16 %v1099
    %v1123 = vpack.c.b16 %v1116, %v1115
    %v1124 = vpack.c.b16 %v1118, %v1117
    %v1125 = vpack.c.b16 %v1120, %v1119
    %v1126 = vpack.c.b16 %v1122, %v1121
    %vm1131 = vcmask 523264
    %v1133 = vsel %vm1131, %v1091, 0
    %1135 = vmatprep.subr.bf16.mxu0 0
    %1136 = vmatpush1.bf16.msra.mxu0 0
    %1137 = vmatprep.subr.bf16.mxu0 0
    %1138 = vmatpush1.bf16.msra.mxu0 0
    %1139 = vmatprep.subr.bf16.mxu0 0
    %1140 = vmatpush1.bf16.msra.mxu0 0
    %1141 = vmatprep.subr.bf16.mxu0 0
    %1142 = vmatpush1.bf16.msra.mxu0 0
    %1143 = vmatprep.subr.bf16.mxu0 0
    %1144 = vmatpush1.bf16.msra.mxu0 %v1126
    %1145 = vmatprep.subr.bf16.mxu0 0
    %1146 = vmatpush1.bf16.msra.mxu0 %v1125
    %1147 = vmatprep.subr.bf16.mxu0 0
    %1148 = vmatpush1.bf16.msra.mxu0 %v1124
    %1149 = vmatprep.subr.bf16.mxu0 0
    %1150 = vmatpush1.bf16.msra.mxu0 %v1123
    %1151 = vmatprep.subr.bf16.mxu0 0
    %1152 = vmatpush2.bf16.msra.mxu0 0
    %1153 = vmatprep.subr.bf16.mxu0 0
    %1154 = vmatpush2.bf16.msra.mxu0 0
    %1155 = vmatprep.subr.bf16.mxu0 0
    %1156 = vmatpush2.bf16.msra.mxu0 0
    %1157 = vmatprep.subr.bf16.mxu0 0
    %1158 = vmatpush2.bf16.msra.mxu0 0
    %1159 = vmatprep.subr.bf16.mxu0 0
    %1160 = vmatpush2.bf16.msra.mxu0 0
    %1161 = vmatprep.subr.bf16.mxu0 0
    %1162 = vmatpush2.bf16.msra.mxu0 0
    %1163 = vmatprep.subr.bf16.mxu0 0
    %1164 = vmatpush2.bf16.msra.mxu0 0
    %1165 = vmatprep.subr.bf16.mxu0 0
    %1166 = vmatpush2.bf16.msra.mxu0 0
    %1167 = vmatprep.mubr.bf16.mxu0 0
    %1168 = vmatmul.mubr.bf16.gmra.mxu0 %v1133
    %v1169 = vpop.f32.mrf.mxu0
    %v1170 = vadd.f32 %v1105, %v1169
    %v1171 = vpop.f32.mrf.mxu0
    %v1172 = vpop.f32.mrf.mxu0
    %v1173 = vadd.f32 %v1105, %v1172
    %v1174 = vpop.f32.mrf.mxu0
    %1175 = vdwg.mxu0
    %v1176 = vadd.f32 %v1170, %v1011
    %v1177 = vadd.f32 %v1173, %v1012
    %v1178 = vld [vmem:[%s11] sm:$0x1]
    %v1179 = vld [vmem:[%s12] sm:$0x1]
    %v1180 = vsel %vm966, %v1176, 0.0
    %v1181 = vsel %vm968, %v1177, 0.0
    %v1182 = vadd.f32 %v1180, %v1181
    %v1183 = vrot.slane %v1182, 4
    %v1184 = vadd.f32 %v1182, %v1183
    %v1185 = vrot.slane %v1184, 2
    %v1186 = vadd.f32 %v1184, %v1185
    %v1187 = vrot.slane %v1186, 1
    %v1188 = vadd.f32 %v1186, %v1187
    %v1189 = vmul.f32 %v1188, %v977
    %v1190 = vsub.f32 %v1176, %v1189
    %v1191 = vsub.f32 %v1177, %v1189
    %v1192 = vmul.f32 %v1190, %v1190
    %v1193 = vmul.f32 %v1191, %v1191
    %v1194 = vsel %vm966, %v1192, 0.0
    %v1195 = vsel %vm968, %v1193, 0.0
    %v1196 = vadd.f32 %v1194, %v1195
    %v1197 = vrot.slane %v1196, 4
    %v1198 = vadd.f32 %v1196, %v1197
    %v1199 = vrot.slane %v1198, 2
    %v1200 = vadd.f32 %v1198, %v1199
    %v1201 = vrot.slane %v1200, 1
    %v1202 = vadd.f32 %v1200, %v1201
    %v1203 = vmul.f32 %v1202, %v977
    %v1204 = vadd.f32 %v1203, 1e-05
    %v1205 = vrsqrt.pop %v1204
    %v1206 = vmul.f32 %v1190, %v1205
    %v1207 = vmul.f32 %v1191, %v1205
    %v1209 = vlaneseq
    %v1210 = vshrl.u32 %v1209, 7
    %v1211 = vsub.s32 0, %v1210
    %v1212 = vrot.slane %v1178, %v1211
    %v1214 = vmul.f32 %v1206, %v1212
    %v1215 = vmul.f32 %v1207, %v1212
    %v1217 = vlaneseq
    %v1218 = vshrl.u32 %v1217, 7
    %v1219 = vsub.s32 0, %v1218
    %v1220 = vrot.slane %v1179, %v1219
    %v1222 = vadd.f32 %v1214, %v1220
    %v1223 = vadd.f32 %v1215, %v1220
    %v1224 = vmul.f32 %v1222, 0.5
    %v1225 = vmul.f32 %v1223, 0.5
    %v1226 = vmul.f32 %v1222, 0.70710677
    %v1227 = vmul.f32 %v1223, 0.70710677
    %v1228 = verf.f32.pop %v1226
    %v1229 = verf.f32.pop %v1227
    %v1230 = vadd.f32 %v1228, 1.0
    %v1231 = vadd.f32 %v1229, 1.0
    %v1232 = vmul.f32 %v1224, %v1230
    %v1233 = vmul.f32 %v1225, %v1231
    %1234 = vst.msk [vmem:[#allocation2] sm:$0xff] %vm966, %v1232
    %1235 = vst.msk [vmem:[#allocation2 + $0x8] sm:$0xf] %vm968, %v1233
    %v1236 = vpack.c.bf16 %v1223, %v1222
    %v1237 = vld [vmem:[%s18] sm:$0xf]
    %v1238 = vld [vmem:[%s18 + $0x4] sm:$0xf]
    %v1239 = vld [vmem:[%s18 + $0x8] sm:$0xf]
    %v1240 = vld [vmem:[%s18 + $0xc] sm:$0xf]
    %v1245 = vunpack.c.l.b16 %v1237
    %v1246 = vunpack.c.l.b16 %v1238
    %v1247 = vunpack.c.l.b16 %v1239
    %v1248 = vunpack.c.l.b16 %v1240
    %v1249 = vpack.c.b16 %v1246, %v1245
    %v1250 = vpack.c.b16 %v1248, %v1247
    %v1254 = vsel %vm966, %v1236, 0
    %1256 = vmatprep.subr.bf16.mxu0 0
    %1257 = vmatpush1.bf16.msra.mxu0 0
    %1258 = vmatprep.subr.bf16.mxu0 0
    %1259 = vmatpush1.bf16.msra.mxu0 0
    %1260 = vmatprep.subr.bf16.mxu0 0
    %1261 = vmatpush1.bf16.msra.mxu0 0
    %1262 = vmatprep.subr.bf16.mxu0 0
    %1263 = vmatpush1.bf16.msra.mxu0 0
    %1264 = vmatprep.subr.bf16.mxu0 0
    %1265 = vmatpush1.bf16.msra.mxu0 0
    %1266 = vmatprep.subr.bf16.mxu0 0
    %1267 = vmatpush1.bf16.msra.mxu0 0
    %1268 = vmatprep.subr.bf16.mxu0 0
    %1269 = vmatpush1.bf16.msra.mxu0 %v1250
    %1270 = vmatprep.subr.bf16.mxu0 0
    %1271 = vmatpush1.bf16.msra.mxu0 %v1249
    %1272 = vmatprep.subr.bf16.mxu0 0
    %1273 = vmatpush2.bf16.msra.mxu0 0
    %1274 = vmatprep.subr.bf16.mxu0 0
    %1275 = vmatpush2.bf16.msra.mxu0 0
    %1276 = vmatprep.subr.bf16.mxu0 0
    %1277 = vmatpush2.bf16.msra.mxu0 0
    %1278 = vmatprep.subr.bf16.mxu0 0
    %1279 = vmatpush2.bf16.msra.mxu0 0
    %1280 = vmatprep.subr.bf16.mxu0 0
    %1281 = vmatpush2.bf16.msra.mxu0 0
    %1282 = vmatprep.subr.bf16.mxu0 0
    %1283 = vmatpush2.bf16.msra.mxu0 0
    %1284 = vmatprep.subr.bf16.mxu0 0
    %1285 = vmatpush2.bf16.msra.mxu0 0
    %1286 = vmatprep.subr.bf16.mxu0 0
    %1287 = vmatpush2.bf16.msra.mxu0 0
    %1288 = vmatprep.mubr.bf16.mxu0 0
    %1289 = vmatmul.mubr.bf16.gmra.mxu0 %v1254
    %v1290 = vpop.f32.mrf.mxu0
    %v1291 = vadd.f32 0.0, %v1290
    %v1292 = vpop.f32.mrf.mxu0
    %v1293 = vpop.f32.mrf.mxu0
    %v1294 = vadd.f32 0.0, %v1293
    %v1295 = vpop.f32.mrf.mxu0
    %1296 = vdwg.mxu0
    %v1297 = vld [vmem:[%s19] sm:$0xf]
    %v1298 = vld [vmem:[%s19 + $0x4] sm:$0xf]
    %v1299 = vld [vmem:[%s19 + $0x8] sm:$0xf]
    %v1300 = vld [vmem:[%s19 + $0xc] sm:$0xf]
    %v1305 = vunpack.c.l.b16 %v1297
    %v1306 = vunpack.c.l.b16 %v1298
    %v1307 = vunpack.c.l.b16 %v1299
    %v1308 = vunpack.c.l.b16 %v1300
    %v1309 = vpack.c.b16 %v1306, %v1305
    %v1310 = vpack.c.b16 %v1308, %v1307
    %1313 = vmatprep.subr.bf16.mxu0 0
    %1314 = vmatpush1.bf16.msra.mxu0 0
    %1315 = vmatprep.subr.bf16.mxu0 0
    %1316 = vmatpush1.bf16.msra.mxu0 0
    %1317 = vmatprep.subr.bf16.mxu0 0
    %1318 = vmatpush1.bf16.msra.mxu0 0
    %1319 = vmatprep.subr.bf16.mxu0 0
    %1320 = vmatpush1.bf16.msra.mxu0 0
    %1321 = vmatprep.subr.bf16.mxu0 0
    %1322 = vmatpush1.bf16.msra.mxu0 0
    %1323 = vmatprep.subr.bf16.mxu0 0
    %1324 = vmatpush1.bf16.msra.mxu0 0
    %1325 = vmatprep.subr.bf16.mxu0 0
    %1326 = vmatpush1.bf16.msra.mxu0 %v1310
    %1327 = vmatprep.subr.bf16.mxu0 0
    %1328 = vmatpush1.bf16.msra.mxu0 %v1309
    %1329 = vmatprep.subr.bf16.mxu0 0
    %1330 = vmatpush2.bf16.msra.mxu0 0
    %1331 = vmatprep.subr.bf16.mxu0 0
    %1332 = vmatpush2.bf16.msra.mxu0 0
    %1333 = vmatprep.subr.bf16.mxu0 0
    %1334 = vmatpush2.bf16.msra.mxu0 0
    %1335 = vmatprep.subr.bf16.mxu0 0
    %1336 = vmatpush2.bf16.msra.mxu0 0
    %1337 = vmatprep.subr.bf16.mxu0 0
    %1338 = vmatpush2.bf16.msra.mxu0 0
    %1339 = vmatprep.subr.bf16.mxu0 0
    %1340 = vmatpush2.bf16.msra.mxu0 0
    %1341 = vmatprep.subr.bf16.mxu0 0
    %1342 = vmatpush2.bf16.msra.mxu0 0
    %1343 = vmatprep.subr.bf16.mxu0 0
    %1344 = vmatpush2.bf16.msra.mxu0 0
    %1345 = vmatprep.mubr.bf16.mxu0 0
    %1346 = vmatmul.mubr.bf16.gmra.mxu0 %v1254
    %v1347 = vpop.f32.mrf.mxu0
    %v1348 = vadd.f32 0.0, %v1347
    %v1349 = vpop.f32.mrf.mxu0
    %v1350 = vpop.f32.mrf.mxu0
    %v1351 = vadd.f32 0.0, %v1350
    %v1352 = vpop.f32.mrf.mxu0
    %1353 = vdwg.mxu0
    %v1354 = vld [vmem:[%s4] sm:$0xff]
    %v1355 = vld [vmem:[%s4 + $0x8] sm:$0xff]
    %v1356 = vld [vmem:[%s4 + $0x10] sm:$0xff]
    %v1357 = vpack.c.bf16 %v1355, %v1354
    %v1358 = vpack.c.bf16 %v1356, %v1356
    %v1359 = vld [vmem:[%s17] sm:$0xf]
    %v1361 = vsel %vm212, %v1294, 0
    %1363 = vmatprep.subr.mxu0 0.0
    %1364 = vmatpush1.msra.mxu0 0.0
    %1365 = vmatprep.subr.mxu0 0.0
    %1366 = vmatpush1.msra.mxu0 0.0
    %1367 = vmatprep.subr.mxu0 0.0
    %1368 = vmatpush1.msra.mxu0 0.0
    %1369 = vmatprep.subr.mxu0 0.0
    %1370 = vmatpush1.msra.mxu0 0.0
    %1371 = vmatprep.subr.mxu0 0.0
    %1372 = vmatpush1.msra.mxu0 0.0
    %1373 = vmatprep.subr.mxu0 0.0
    %1374 = vmatpush1.msra.mxu0 0.0
    %1375 = vmatprep.subr.mxu0 0.0
    %1376 = vmatpush1.msra.mxu0 0.0
    %1377 = vmatprep.subr.mxu0 0.0
    %1378 = vmatpush1.msra.mxu0 0.0
    %1379 = vmatprep.subr.mxu0 0.0
    %1380 = vmatpush1.msra.mxu0 0.0
    %1381 = vmatprep.subr.mxu0 0.0
    %1382 = vmatpush1.msra.mxu0 0.0
    %1383 = vmatprep.subr.mxu0 0.0
    %1384 = vmatpush1.msra.mxu0 0.0
    %1385 = vmatprep.subr.mxu0 0.0
    %1386 = vmatpush1.msra.mxu0 0.0
    %1387 = vmatprep.subr.mxu0 0.0
    %1388 = vmatpush1.msra.mxu0 0.0
    %1389 = vmatprep.subr.mxu0 0.0
    %1390 = vmatpush1.msra.mxu0 0.0
    %1391 = vmatprep.subr.mxu0 0.0
    %1392 = vmatpush1.msra.mxu0 %v1361
    %1393 = vmatprep.subr.mxu0 0.0
    %1394 = vmatpush1.msra.mxu0 %v1291
    %1395 = vmatprep.subr.mxu0 0.0
    %1396 = vmatpush2.msra.mxu0 0.0
    %1397 = vmatprep.subr.mxu0 0.0
    %1398 = vmatpush2.msra.mxu0 0.0
    %1399 = vmatprep.subr.mxu0 0.0
    %1400 = vmatpush2.msra.mxu0 0.0
    %1401 = vmatprep.subr.mxu0 0.0
    %1402 = vmatpush2.msra.mxu0 0.0
    %1403 = vmatprep.subr.mxu0 0.0
    %1404 = vmatpush2.msra.mxu0 0.0
    %1405 = vmatprep.subr.mxu0 0.0
    %1406 = vmatpush2.msra.mxu0 0.0
    %1407 = vmatprep.subr.mxu0 0.0
    %1408 = vmatpush2.msra.mxu0 0.0
    %1409 = vmatprep.subr.mxu0 0.0
    %1410 = vmatpush2.msra.mxu0 0.0
    %1411 = vmatprep.subr.mxu0 0.0
    %1412 = vmatpush2.msra.mxu0 0.0
    %1413 = vmatprep.subr.mxu0 0.0
    %1414 = vmatpush2.msra.mxu0 0.0
    %1415 = vmatprep.subr.mxu0 0.0
    %1416 = vmatpush2.msra.mxu0 0.0
    %1417 = vmatprep.subr.mxu0 0.0
    %1418 = vmatpush2.msra.mxu0 0.0
    %1419 = vmatprep.subr.mxu0 0.0
    %1420 = vmatpush2.msra.mxu0 0.0
    %1421 = vmatprep.subr.mxu0 0.0
    %1422 = vmatpush2.msra.mxu0 0.0
    %1423 = vmatprep.subr.mxu0 0.0
    %1424 = vmatpush2.msra.mxu0 0.0
    %1425 = vmatprep.subr.mxu0 0.0
    %1426 = vmatpush2.msra.mxu0 0.0
    %1427 = vmatprep.mubr.f32.mxu0 0.0
    %1428 = vmatmul.mubr.f32.gmra.mxu0 %v364
    %v1429 = vpop.f32.mrf.mxu0
    %v1430 = vadd.f32 0.0, %v1429
    %v1431 = vpop.f32.mrf.mxu0
    %1432 = vmatprep.mubr.f32.mxu0 0.0
    %1433 = vmatmul.mubr.f32.gmra.mxu0 %v367
    %v1434 = vpop.f32.mrf.mxu0
    %v1435 = vadd.f32 0.0, %v1434
    %v1436 = vpop.f32.mrf.mxu0
    %1437 = vmatprep.mubr.f32.mxu0 0.0
    %1438 = vmatmul.mubr.f32.gmra.mxu0 %v370
    %v1439 = vpop.f32.mrf.mxu0
    %v1440 = vadd.f32 0.0, %v1439
    %v1441 = vpop.f32.mrf.mxu0
    %1442 = vdwg.mxu0
    %v1444 = vsel %vm205, %v1357, 0
    %v1447 = vsel %vm205, %v1358, 0
    %v1450 = vsel %vm212, %v1359, 0
    %1452 = vmatprep.subr.bf16.mxu0 0
    %1453 = vmatpush1.bf16.msra.mxu0 0
    %1454 = vmatprep.subr.bf16.mxu0 0
    %1455 = vmatpush1.bf16.msra.mxu0 0
    %1456 = vmatprep.subr.bf16.mxu0 0
    %1457 = vmatpush1.bf16.msra.mxu0 0
    %1458 = vmatprep.subr.bf16.mxu0 0
    %1459 = vmatpush1.bf16.msra.mxu0 0
    %1460 = vmatprep.subr.bf16.mxu0 0
    %1461 = vmatpush1.bf16.msra.mxu0 0
    %1462 = vmatprep.subr.bf16.mxu0 0
    %1463 = vmatpush1.bf16.msra.mxu0 0
    %1464 = vmatprep.subr.bf16.mxu0 0
    %1465 = vmatpush1.bf16.msra.mxu0 0
    %1466 = vmatprep.subr.bf16.mxu0 0
    %1467 = vmatpush1.bf16.msra.mxu0 %v1450
    %1468 = vmatprep.subr.bf16.mxu0 0
    %1469 = vmatpush2.bf16.msra.mxu0 0
    %1470 = vmatprep.subr.bf16.mxu0 0
    %1471 = vmatpush2.bf16.msra.mxu0 0
    %1472 = vmatprep.subr.bf16.mxu0 0
    %1473 = vmatpush2.bf16.msra.mxu0 0
    %1474 = vmatprep.subr.bf16.mxu0 0
    %1475 = vmatpush2.bf16.msra.mxu0 0
    %1476 = vmatprep.subr.bf16.mxu0 0
    %1477 = vmatpush2.bf16.msra.mxu0 0
    %1478 = vmatprep.subr.bf16.mxu0 0
    %1479 = vmatpush2.bf16.msra.mxu0 0
    %1480 = vmatprep.subr.bf16.mxu0 0
    %1481 = vmatpush2.bf16.msra.mxu0 0
    %1482 = vmatprep.subr.bf16.mxu0 0
    %1483 = vmatpush2.bf16.msra.mxu0 0
    %1484 = vmatprep.mubr.bf16.mxu0 0
    %1485 = vmatmul.mubr.bf16.gmra.mxu0 %v1444
    %v1486 = vpop.f32.mrf.mxu0
    %v1487 = vadd.f32 %v1430, %v1486
    %v1488 = vpop.f32.mrf.mxu0
    %v1489 = vpop.f32.mrf.mxu0
    %v1490 = vadd.f32 %v1435, %v1489
    %v1491 = vpop.f32.mrf.mxu0
    %1492 = vmatprep.mubr.bf16.mxu0 0
    %1493 = vmatmul.mubr.bf16.gmra.mxu0 %v1447
    %v1494 = vpop.f32.mrf.mxu0
    %v1495 = vadd.f32 %v1440, %v1494
    %v1496 = vpop.f32.mrf.mxu0
    %v1497 = vpop.f32.mrf.mxu0
    %v1498 = vpop.f32.mrf.mxu0
    %1499 = vdwg.mxu0
    %v1501 = vsel %vm212, %v1351, 0
    %1503 = vmatprep.subr.mxu0 0.0
    %1504 = vmatpush1.msra.mxu0 0.0
    %1505 = vmatprep.subr.mxu0 0.0
    %1506 = vmatpush1.msra.mxu0 0.0
    %1507 = vmatprep.subr.mxu0 0.0
    %1508 = vmatpush1.msra.mxu0 0.0
    %1509 = vmatprep.subr.mxu0 0.0
    %1510 = vmatpush1.msra.mxu0 0.0
    %1511 = vmatprep.subr.mxu0 0.0
    %1512 = vmatpush1.msra.mxu0 0.0
    %1513 = vmatprep.subr.mxu0 0.0
    %1514 = vmatpush1.msra.mxu0 0.0
    %1515 = vmatprep.subr.mxu0 0.0
    %1516 = vmatpush1.msra.mxu0 0.0
    %1517 = vmatprep.subr.mxu0 0.0
    %1518 = vmatpush1.msra.mxu0 0.0
    %1519 = vmatprep.subr.mxu0 0.0
    %1520 = vmatpush1.msra.mxu0 0.0
    %1521 = vmatprep.subr.mxu0 0.0
    %1522 = vmatpush1.msra.mxu0 0.0
    %1523 = vmatprep.subr.mxu0 0.0
    %1524 = vmatpush1.msra.mxu0 0.0
    %1525 = vmatprep.subr.mxu0 0.0
    %1526 = vmatpush1.msra.mxu0 0.0
    %1527 = vmatprep.subr.mxu0 0.0
    %1528 = vmatpush1.msra.mxu0 0.0
    %1529 = vmatprep.subr.mxu0 0.0
    %1530 = vmatpush1.msra.mxu0 0.0
    %1531 = vmatprep.subr.mxu0 0.0
    %1532 = vmatpush1.msra.mxu0 %v1501
    %1533 = vmatprep.subr.mxu0 0.0
    %1534 = vmatpush1.msra.mxu0 %v1348
    %1535 = vmatprep.subr.mxu0 0.0
    %1536 = vmatpush2.msra.mxu0 0.0
    %1537 = vmatprep.subr.mxu0 0.0
    %1538 = vmatpush2.msra.mxu0 0.0
    %1539 = vmatprep.subr.mxu0 0.0
    %1540 = vmatpush2.msra.mxu0 0.0
    %1541 = vmatprep.subr.mxu0 0.0
    %1542 = vmatpush2.msra.mxu0 0.0
    %1543 = vmatprep.subr.mxu0 0.0
    %1544 = vmatpush2.msra.mxu0 0.0
    %1545 = vmatprep.subr.mxu0 0.0
    %1546 = vmatpush2.msra.mxu0 0.0
    %1547 = vmatprep.subr.mxu0 0.0
    %1548 = vmatpush2.msra.mxu0 0.0
    %1549 = vmatprep.subr.mxu0 0.0
    %1550 = vmatpush2.msra.mxu0 0.0
    %1551 = vmatprep.subr.mxu0 0.0
    %1552 = vmatpush2.msra.mxu0 0.0
    %1553 = vmatprep.subr.mxu0 0.0
    %1554 = vmatpush2.msra.mxu0 0.0
    %1555 = vmatprep.subr.mxu0 0.0
    %1556 = vmatpush2.msra.mxu0 0.0
    %1557 = vmatprep.subr.mxu0 0.0
    %1558 = vmatpush2.msra.mxu0 0.0
    %1559 = vmatprep.subr.mxu0 0.0
    %1560 = vmatpush2.msra.mxu0 0.0
    %1561 = vmatprep.subr.mxu0 0.0
    %1562 = vmatpush2.msra.mxu0 0.0
    %1563 = vmatprep.subr.mxu0 0.0
    %1564 = vmatpush2.msra.mxu0 0.0
    %1565 = vmatprep.subr.mxu0 0.0
    %1566 = vmatpush2.msra.mxu0 0.0
    %1567 = vmatprep.mubr.f32.mxu0 0.0
    %1568 = vmatmul.mubr.f32.gmra.mxu0 %v266
    %v1569 = vpop.f32.mrf.mxu0
    %v1570 = vadd.f32 0.0, %v1569
    %v1571 = vpop.f32.mrf.mxu0
    %1572 = vmatprep.mubr.f32.mxu0 0.0
    %1573 = vmatmul.mubr.f32.gmra.mxu0 %v269
    %v1574 = vpop.f32.mrf.mxu0
    %v1575 = vadd.f32 0.0, %v1574
    %v1576 = vpop.f32.mrf.mxu0
    %1577 = vmatprep.mubr.f32.mxu0 0.0
    %1578 = vmatmul.mubr.f32.gmra.mxu0 %v272
    %v1579 = vpop.f32.mrf.mxu0
    %v1580 = vadd.f32 0.0, %v1579
    %v1581 = vpop.f32.mrf.mxu0
    %1582 = vdwg.mxu0
    %v1583 = vadd.f32 %v1487, %v1570
    %v1584 = vadd.f32 %v1490, %v1575
    %v1585 = vadd.f32 %v1495, %v1580
    %v1586 = vld [vmem:[%s20] sm:$0x1]
    %v1588 = vlaneseq
    %v1589 = vshrl.u32 %v1588, 7
    %v1590 = vsub.s32 0, %v1589
    %v1591 = vrot.slane %v1586, %v1590
    %v1593 = vadd.f32 %v1583, %v1591
    %v1594 = vadd.f32 %v1584, %v1591
    %v1595 = vadd.f32 %v1585, %v1591
    %v1596 = vmul.f32 %v1593, 0.5
    %v1597 = vmul.f32 %v1594, 0.5
    %v1598 = vmul.f32 %v1595, 0.5
    %v1599 = vmul.f32 %v1593, 0.70710677
    %v1600 = vmul.f32 %v1594, 0.70710677
    %v1601 = vmul.f32 %v1595, 0.70710677
    %v1602 = verf.f32.pop %v1599
    %v1603 = verf.f32.pop %v1600
    %v1604 = verf.f32.pop %v1601
    %v1605 = vadd.f32 %v1602, 1.0
    %v1606 = vadd.f32 %v1603, 1.0
    %v1607 = vadd.f32 %v1604, 1.0
    %v1608 = vmul.f32 %v1596, %v1605
    %v1609 = vmul.f32 %v1597, %v1606
    %v1610 = vmul.f32 %v1598, %v1607
    %v1611 = vpack.c.bf16 %v1609, %v1608
    %v1612 = vpack.c.bf16 %v1610, %v1610
    %v1613 = vld [vmem:[%s21] sm:$0xf]
    %v1614 = vld [vmem:[%s22] sm:$0x1]
    %v1616 = vlaneseq
    %v1617 = vshrl.u32 %v1616, 7
    %v1618 = vsub.s32 0, %v1617
    %v1619 = vrot.slane %v1614, %v1618
    %v1622 = vsel %vm205, %v1611, 0
    %v1625 = vsel %vm205, %v1612, 0
    %v1628 = vsel %vm212, %v1613, 0
    %1630 = vmatprep.subr.bf16.mxu0 0
    %1631 = vmatpush1.bf16.msra.mxu0 0
    %1632 = vmatprep.subr.bf16.mxu0 0
    %1633 = vmatpush1.bf16.msra.mxu0 0
    %1634 = vmatprep.subr.bf16.mxu0 0
    %1635 = vmatpush1.bf16.msra.mxu0 0
    %1636 = vmatprep.subr.bf16.mxu0 0
    %1637 = vmatpush1.bf16.msra.mxu0 0
    %1638 = vmatprep.subr.bf16.mxu0 0
    %1639 = vmatpush1.bf16.msra.mxu0 0
    %1640 = vmatprep.subr.bf16.mxu0 0
    %1641 = vmatpush1.bf16.msra.mxu0 0
    %1642 = vmatprep.subr.bf16.mxu0 0
    %1643 = vmatpush1.bf16.msra.mxu0 0
    %1644 = vmatprep.subr.bf16.mxu0 0
    %1645 = vmatpush1.bf16.msra.mxu0 %v1628
    %1646 = vmatprep.subr.bf16.mxu0 0
    %1647 = vmatpush2.bf16.msra.mxu0 0
    %1648 = vmatprep.subr.bf16.mxu0 0
    %1649 = vmatpush2.bf16.msra.mxu0 0
    %1650 = vmatprep.subr.bf16.mxu0 0
    %1651 = vmatpush2.bf16.msra.mxu0 0
    %1652 = vmatprep.subr.bf16.mxu0 0
    %1653 = vmatpush2.bf16.msra.mxu0 0
    %1654 = vmatprep.subr.bf16.mxu0 0
    %1655 = vmatpush2.bf16.msra.mxu0 0
    %1656 = vmatprep.subr.bf16.mxu0 0
    %1657 = vmatpush2.bf16.msra.mxu0 0
    %1658 = vmatprep.subr.bf16.mxu0 0
    %1659 = vmatpush2.bf16.msra.mxu0 0
    %1660 = vmatprep.subr.bf16.mxu0 0
    %1661 = vmatpush2.bf16.msra.mxu0 0
    %1662 = vmatprep.mubr.bf16.mxu0 0
    %1663 = vmatmul.mubr.bf16.gmra.mxu0 %v1622
    %v1664 = vpop.f32.mrf.mxu0
    %v1665 = vadd.f32 %v1619, %v1664
    %v1666 = vpop.f32.mrf.mxu0
    %v1667 = vpop.f32.mrf.mxu0
    %v1668 = vadd.f32 %v1619, %v1667
    %v1669 = vpop.f32.mrf.mxu0
    %1670 = vmatprep.mubr.bf16.mxu0 0
    %1671 = vmatmul.mubr.bf16.gmra.mxu0 %v1625
    %v1672 = vpop.f32.mrf.mxu0
    %v1673 = vadd.f32 %v1619, %v1672
    %v1674 = vpop.f32.mrf.mxu0
    %v1675 = vpop.f32.mrf.mxu0
    %v1676 = vpop.f32.mrf.mxu0
    %1677 = vdwg.mxu0
    %v1678 = vld [vmem:[%s23] sm:$0x1]
    %v1679 = vld [vmem:[%s24] sm:$0x1]
    %v1680 = vsel %vm205, %v1665, 0.0
    %v1681 = vsel %vm205, %v1668, 0.0
    %v1682 = vadd.f32 %v1680, %v1681
    %v1683 = vsel %vm205, %v1673, 0.0
    %v1684 = vadd.f32 %v1682, %v1683
    %v1685 = vrot.slane %v1684, 4
    %v1686 = vadd.f32 %v1684, %v1685
    %v1687 = vrot.slane %v1686, 2
    %v1688 = vadd.f32 %v1686, %v1687
    %v1689 = vrot.slane %v1688, 1
    %v1690 = vadd.f32 %v1688, %v1689
    %v1691 = vrcp.pop 24.0
    %v1692 = vmul.f32 %v1690, %v1691
    %v1693 = vsub.f32 %v1665, %v1692
    %v1694 = vsub.f32 %v1668, %v1692
    %v1695 = vsub.f32 %v1673, %v1692
    %v1696 = vmul.f32 %v1693, %v1693
    %v1697 = vmul.f32 %v1694, %v1694
    %v1698 = vmul.f32 %v1695, %v1695
    %v1699 = vsel %vm205, %v1696, 0.0
    %v1700 = vsel %vm205, %v1697, 0.0
    %v1701 = vadd.f32 %v1699, %v1700
    %v1702 = vsel %vm205, %v1698, 0.0
    %v1703 = vadd.f32 %v1701, %v1702
    %v1704 = vrot.slane %v1703, 4
    %v1705 = vadd.f32 %v1703, %v1704
    %v1706 = vrot.slane %v1705, 2
    %v1707 = vadd.f32 %v1705, %v1706
    %v1708 = vrot.slane %v1707, 1
    %v1709 = vadd.f32 %v1707, %v1708
    %v1710 = vmul.f32 %v1709, %v1691
    %v1711 = vadd.f32 %v1710, 1e-05
    %v1712 = vrsqrt.pop %v1711
    %v1713 = vmul.f32 %v1693, %v1712
    %v1714 = vmul.f32 %v1694, %v1712
    %v1715 = vmul.f32 %v1695, %v1712
    %v1717 = vlaneseq
    %v1718 = vshrl.u32 %v1717, 7
    %v1719 = vsub.s32 0, %v1718
    %v1720 = vrot.slane %v1678, %v1719
    %v1722 = vmul.f32 %v1713, %v1720
    %v1723 = vmul.f32 %v1714, %v1720
    %v1724 = vmul.f32 %v1715, %v1720
    %v1726 = vlaneseq
    %v1727 = vshrl.u32 %v1726, 7
    %v1728 = vsub.s32 0, %v1727
    %v1729 = vrot.slane %v1679, %v1728
    %v1731 = vadd.f32 %v1722, %v1729
    %v1732 = vadd.f32 %v1723, %v1729
    %v1733 = vadd.f32 %v1724, %v1729
    %v1734 = vmul.f32 %v1731, 0.5
    %v1735 = vmul.f32 %v1732, 0.5
    %v1736 = vmul.f32 %v1733, 0.5
    %v1737 = vmul.f32 %v1731, 0.70710677
    %v1738 = vmul.f32 %v1732, 0.70710677
    %v1739 = vmul.f32 %v1733, 0.70710677
    %v1740 = verf.f32.pop %v1737
    %v1741 = verf.f32.pop %v1738
    %v1742 = verf.f32.pop %v1739
    %v1743 = vadd.f32 %v1740, 1.0
    %v1744 = vadd.f32 %v1741, 1.0
    %v1745 = vadd.f32 %v1742, 1.0
    %v1746 = vmul.f32 %v1734, %v1743
    %v1747 = vmul.f32 %v1735, %v1744
    %v1748 = vmul.f32 %v1736, %v1745
    %1749 = vst.msk [vmem:[%s26] sm:$0xff] %vm205, %v1746
    %1750 = vst.msk [vmem:[%s26 + $0x8] sm:$0xff] %vm205, %v1747
    %1751 = vst.msk [vmem:[%s26 + $0x10] sm:$0xff] %vm205, %v1748
    // Predicated region
    $region102: #{tpu_custom_call.1} parent=1 // pred_check
      _
    $region103: #{tpu_custom_call.1} parent=1 // pred_check_branch
      %1753 = sbr.rel (0) target = $region105
    $region104: #{tpu_custom_call.1} parent=1 // pred_region
      %s1755 = ssub.s32 256, 256
      %1756 = vsyncadd [#allocation3], %s1755
      %s1757 = sshll.u32 [#allocation2], 4
      %s1758 = int_to_ptr.vmem [resolvable:$true] %s1757
      %1763 = dma.vmem_to_hbm [thread:$0]  %s1758, 256, %s25, [#allocation3], 128, 128, 8
    $region105: #{tpu_custom_call.1} parent=1 // pred_fallthru
      _
    // Predicated region
    $region106: #{tpu_custom_call.1} parent=1 // pred_check
      _
    $region107: #{tpu_custom_call.1} parent=1 // pred_check_branch
      %1765 = sbr.rel (0) target = $region109
    $region108: #{tpu_custom_call.1} parent=1 // pred_region
      _
    $region109: #{tpu_custom_call.1} parent=1 // pred_fallthru
      _
    // Predicated region
    $region110: #{tpu_custom_call.1} parent=1 // pred_check
      _
    $region111: #{tpu_custom_call.1} parent=1 // pred_check_branch
      %1767 = sbr.rel (0) target = $region113
    $region112: #{tpu_custom_call.1} parent=1 // pred_region
      %1768 = dma.done [#allocation3], 256
    $region113: #{tpu_custom_call.1} parent=1 // pred_fallthru
      _
    // Predicated region
    $region114: #{tpu_custom_call.1} parent=1 // pred_check
      _
    $region115: #{tpu_custom_call.1} parent=1 // pred_check_branch
      %1770 = sbr.rel (0) target = $region117
    $region116: #{tpu_custom_call.1} parent=1 // pred_region
      _
    $region117: #{tpu_custom_call.1} parent=1 // pred_fallthru
      _
    %1771 = vsyncpa [#allocation3], 1

</llo_original>
